<compile_context>
chip_gen: v7x
topology: tpu7x:2x2x1
jax: 0.10.0
libtpu: 0.0.40
codegen_flags: <defaults>
</compile_context>

<pallas_src>
import jax
import jax.numpy as jnp
from jax.experimental import pallas as pl
from jax.experimental.pallas import tpu as pltpu

# ---------------- configuration (scaled-down STFTLoss hyper-params) ----------
N_FFT = 128                                # n_fft
HOP = 32                                   # hop_length
WIN = 64                                   # win_length
WIN_OFF = (N_FFT - WIN) // 2               # window left-pad inside the n_fft frame
FACTOR_SC = 0.1
FACTOR_MAG = 0.1
EPS = float(jnp.finfo(jnp.float32).eps)    # torch.finfo(torch.float32).eps
CLAMP_MIN = 1e-7
N_FREQ = N_FFT // 2 + 1                    # onesided bins (65)
N_PAD = 128                                # freq bins padded to a full lane tile

MAX_TILE_R = 2048                          # frame rows per grid step (upper bound)


def _num_tensorcores() -> int:
    """2-way 'parallel' core split only for v7x-like chips (2 TCs); 1 elsewhere."""
    try:
        kind = jax.devices()[0].device_kind.lower()
    except Exception:
        return 1
    return 2 if ("v7" in kind or "7x" in kind) else 1


# ---------------------------- Pallas kernel ----------------------------------
def _stft_loss_kernel(fr_ref, w_ref, out_ref):
    """One step: (2, tile_r, WIN) stacked x/y frames -> accumulate partial sums.

    out_ref is a (24, 128) per-core accumulator resident across the step axis:
      rows  0: 7  -> sum (y_mag - x_mag)^2
      rows  8:15  -> sum y_mag^2
      rows 16:23  -> sum |log(eps + y_mag) - log(eps + x_mag)|
    """
    @pl.when(pl.program_id(1) == 0)
    def _init():
        out_ref[...] = jnp.zeros_like(out_ref)

    tile_r = fr_ref.shape[1]
    # Collapse the (x, y) leading dim into rows: x frames first, then y frames.
    frames = fr_ref[...].reshape(2 * tile_r, WIN)

    # Real DFT (hann window folded into w) via a single wide MXU matmul.
    ri = jnp.dot(frames, w_ref[...], preferred_element_type=jnp.float32)
    re, im = ri[:, :N_PAD], ri[:, N_PAD:]

    # Single elementwise/EUP pass over the stacked block (mag + log once for x and y).
    mag = jnp.sqrt(jnp.maximum(re * re + im * im, CLAMP_MIN))      # (2*tile_r, 128)
    logm = jnp.log(EPS + mag)

    x_mag, y_mag = mag[:tile_r], mag[tile_r:]
    diff = y_mag - x_mag
    logdiff = jnp.abs(logm[tile_r:] - logm[:tile_r])

    def fold(v):
        # (tile_r, 128) -> (8, 128): layout-preserving reshape + VPU adds across
        # vregs; no per-step cross-lane / cross-sublane XLU reduce.
        return jnp.sum(v.reshape(tile_r // 8, 8, N_PAD), axis=0)

    out_ref[0:8, :] += fold(diff * diff)
    out_ref[8:16, :] += fold(y_mag * y_mag)
    out_ref[16:24, :] += fold(logdiff)


# ------------------------------- glue -----------------------------------------
def _frame_signal(x):
    """x: (B, C, T) float32 -> (B*C*n_frames, WIN) effective frame samples.

    torch.stft(center=True) frames cover padded[f*HOP : f*HOP + N_FFT]; the
    win_length=64 window zero-padded to n_fft=128 only touches samples
    [WIN_OFF, WIN_OFF + WIN) of each frame, so only those 64 samples are gathered.
    """
    B, C, T = x.shape
    pad = N_FFT // 2
    xp = jnp.pad(x, ((0, 0), (0, 0), (pad, pad)), mode="reflect")
    n_frames = 1 + (T + 2 * pad - N_FFT) // HOP
    idx = (jnp.arange(n_frames) * HOP)[:, None] + (WIN_OFF + jnp.arange(WIN))[None, :]
    frames = xp[:, :, idx]                                   # (B, C, F, WIN)
    return frames.reshape(B * C * n_frames, WIN)


def _make_fused_dft_matrix():
    """(WIN, 2*N_PAD) matrix: [hann*cos | hann*(-sin)], each half padded to 128 lanes.

    Only the WIN nonzero rows of the zero-padded window are kept; frame sample m sits
    at position m + WIN_OFF of the length-n_fft DFT input, hence the phase offset.
    """
    n = jnp.arange(WIN, dtype=jnp.float32)
    hann = 0.5 * (1.0 - jnp.cos(2.0 * jnp.pi * n / WIN))     # periodic hann window
    pos = (n + WIN_OFF)[:, None]                             # position inside n_fft frame
    f = jnp.arange(N_FREQ, dtype=jnp.float32)[None, :]
    ang = 2.0 * jnp.pi * pos * f / N_FFT
    cosw = hann[:, None] * jnp.cos(ang)                      # (WIN, N_FREQ)
    sinw = hann[:, None] * (-jnp.sin(ang))
    lane_pad = N_PAD - N_FREQ
    cosw = jnp.pad(cosw, ((0, 0), (0, lane_pad)))
    sinw = jnp.pad(sinw, ((0, 0), (0, lane_pad)))
    return jnp.concatenate([cosw, sinw], axis=1)             # (WIN, 2*N_PAD)


def _round_up(a, b):
    return (a + b - 1) // b * b


@jax.jit
def stft_loss(x, y):
    """x, y: (B, C, T) float32 predicted / ground-truth signals. Returns scalar loss."""
    x = x.astype(jnp.float32)
    y = y.astype(jnp.float32)

    xf = _frame_signal(x)                                    # (R, WIN)
    yf = _frame_signal(y)
    R = xf.shape[0]                                          # total valid frame rows

    n_cores = _num_tensorcores()
    # Adaptive tile size: as big as possible (up to MAX_TILE_R), multiple of 8.
    tile_r = min(MAX_TILE_R, _round_up(pl.cdiv(R, n_cores), 8))
    steps = pl.cdiv(R, n_cores * tile_r)
    r_pad = n_cores * steps * tile_r

    fr = jnp.stack([xf, yf], axis=0)                         # (2, R, WIN)
    fr = jnp.pad(fr, ((0, 0), (0, r_pad - R), (0, 0)))       # zero-pad rows

    w = _make_fused_dft_matrix()                             # (WIN, 2*N_PAD)

    acc = pl.pallas_call(
        _stft_loss_kernel,
        out_shape=jax.ShapeDtypeStruct((n_cores, 24, N_PAD), jnp.float32),
        grid_spec=pltpu.PrefetchScalarGridSpec(
            num_scalar_prefetch=0,
            grid=(n_cores, steps),
            in_specs=[
                pl.BlockSpec((2, tile_r, WIN),
                             lambda c, i: (0, c * steps + i, 0)),     # stacked x/y frames
                pl.BlockSpec((WIN, 2 * N_PAD), lambda c, i: (0, 0)),  # fused win*DFT
            ],
            out_specs=pl.BlockSpec((None, 24, N_PAD), lambda c, i: (c, 0, 0)),
        ),
        compiler_params=pltpu.CompilerParams(
            dimension_semantics=("parallel", "arbitrary"),
            vmem_limit_bytes=32 * 1024 * 1024),
    )(fr, w)

    # Final cross-lane / cross-core reduction (tiny, done in JAX).
    sums = acc.reshape(n_cores, 3, 8, N_PAD).sum(axis=(0, 2, 3))      # (3,)
    ss_diff, ss_y, l1_log = sums[0], sums[1], sums[2]

    # Padded freq lanes (valid rows) and fully-padded rows contribute exactly 0 to
    # ss_diff / l1_log and exactly CLAMP_MIN per element to ss_y: subtract analytically.
    ss_y = jnp.maximum(ss_y - CLAMP_MIN * (N_PAD * r_pad - N_FREQ * R), 0.0)

    sc_loss = jnp.sqrt(ss_diff) / (jnp.sqrt(ss_y) + EPS)
    mag_loss = l1_log / (R * N_FREQ)
    return FACTOR_SC * sc_loss + FACTOR_MAG * mag_loss


# --------------------------- pure-JAX reference -------------------------------
def _ref_loss(x, y):
    """Independent full-width (n_fft) reference mirroring torch.stft semantics."""
    B, C, T = x.shape
    pad = N_FFT // 2
    n = jnp.arange(WIN, dtype=jnp.float32)
    hann = 0.5 * (1.0 - jnp.cos(2.0 * jnp.pi * n / WIN))
    window = jnp.zeros((N_FFT,), jnp.float32).at[WIN_OFF:WIN_OFF + WIN].set(hann)

    k = jnp.arange(N_FFT, dtype=jnp.float32)[:, None]
    f = jnp.arange(N_FREQ, dtype=jnp.float32)[None, :]
    ang = 2.0 * jnp.pi * k * f / N_FFT
    cosm = jnp.cos(ang)
    sinm = -jnp.sin(ang)

    def frames128(sig):
        xp = jnp.pad(sig, ((0, 0), (0, 0), (pad, pad)), mode="reflect")
        n_frames = 1 + (T + 2 * pad - N_FFT) // HOP
        idx = (jnp.arange(n_frames) * HOP)[:, None] + jnp.arange(N_FFT)[None, :]
        return xp[:, :, idx].reshape(B * C * n_frames, N_FFT)

    def mag(sig):
        fw = frames128(sig) * window[None, :]
        re_ = fw @ cosm
        im_ = fw @ sinm
        return jnp.sqrt(jnp.maximum(re_ * re_ + im_ * im_, CLAMP_MIN))

    xm, ym = mag(x), mag(y)
    sc = jnp.linalg.norm(ym - xm) / (jnp.linalg.norm(ym) + EPS)
    mg = jnp.mean(jnp.abs(jnp.log(EPS + ym) - jnp.log(EPS + xm)))
    return FACTOR_SC * sc + FACTOR_MAG * mg


if __name__ == "__main__":
    B, C, T = 2, 2, 2048
    key = jax.random.PRNGKey(0)
    kx, ky = jax.random.split(key)
    x = jax.random.normal(kx, (B, C, T), dtype=jnp.float32)
    y = jax.random.normal(ky, (B, C, T), dtype=jnp.float32)

    out = stft_loss(x, y)
    jax.block_until_ready(out)

    ref = _ref_loss(x, y)
    assert jnp.allclose(out, ref, rtol=1e-3, atol=1e-6), (out, ref)
    print("KERNEL_OK")
</pallas_src>

<mosaic_0001>
module attributes {stable_mosaic.version = 11 : i64} {
  func.func private @main(%arg0: i32) attributes {dimension_semantics = [#tpu.dimension_semantics<core_parallel>], iteration_bounds = array<i64: 2>, tpu.core_type = #tpu.core_type<sc_scalar_subcore>, window_params = []} {
    return
  }
}

module attributes {stable_mosaic.version = 11 : i64} {
  func.func private @main(%arg0: i32) attributes {dimension_semantics = [#tpu.dimension_semantics<core_parallel>], iteration_bounds = array<i64: 2>, tpu.core_type = #tpu.core_type<sc_scalar_subcore>, window_params = []} {
    return
  }
}

module attributes {stable_mosaic.version = 11 : i64} {
  func.func @_stft_loss_kernel(%arg0: i32, %arg1: i32, %arg2: memref<2x264x64xf32, #tpu.memory_space<vmem>>, %arg3: memref<64x256xf32, #tpu.memory_space<vmem>>, %arg4: memref<1x24x128xf32, #tpu.memory_space<vmem>>) attributes {dimension_semantics = [#tpu.dimension_semantics<parallel>, #tpu.dimension_semantics<arbitrary>], iteration_bounds = array<i64: 1, 1>, scalar_prefetch = 0 : i64, scratch_operands = 0 : i64, tpu.core_type = #tpu.core_type<tc>, window_params = [{transform_indices = @transform_0, window_bounds = array<i64: 2, 264, 64>}, {pipeline_mode = #tpu.pipeline_mode<synchronous>, transform_indices = @transform_1, window_bounds = array<i64: 64, 256>}, {transform_indices = @transform_2, window_bounds = array<i64: 1, 24, 128>}]} {
    %c0_i32 = arith.constant 0 : i32
    %0 = arith.cmpi eq, %arg1, %c0_i32 : i32
    %1 = arith.extui %0 : i1 to i32
    %c0_i32_0 = arith.constant 0 : i32
    %2 = arith.cmpi ne, %1, %c0_i32_0 : i32
    scf.if %2 {
      %cst_26 = arith.constant 0.000000e+00 : f32
      %51 = vector.broadcast %cst_26 : f32 to vector<24x128xf32>
      %c0_27 = arith.constant 0 : index
      %c0_28 = arith.constant 0 : index
      %c0_29 = arith.constant 0 : index
      %52 = vector.load %arg4[%c0_27, %c0_28, %c0_29] : memref<1x24x128xf32, #tpu.memory_space<vmem>>, vector<1x24x128xf32>
      %53 = vector.shape_cast %52 : vector<1x24x128xf32> to vector<24x128xf32>
      %54 = vector.shape_cast %51 : vector<24x128xf32> to vector<1x24x128xf32>
      tpu.vector_store %arg4[%c0_27, %c0_28, %c0_29], %54 {strides = array<i32>} : memref<1x24x128xf32, #tpu.memory_space<vmem>>, vector<1x24x128xf32>,
    } else {
    }
    %c0 = arith.constant 0 : index
    %c0_1 = arith.constant 0 : index
    %c0_2 = arith.constant 0 : index
    %3 = vector.load %arg2[%c0, %c0_1, %c0_2] : memref<2x264x64xf32, #tpu.memory_space<vmem>>, vector<2x264x64xf32>
    %4 = vector.shape_cast %3 : vector<2x264x64xf32> to vector<528x64xf32>
    %c0_3 = arith.constant 0 : index
    %c0_4 = arith.constant 0 : index
    %5 = vector.load %arg3[%c0_3, %c0_4] : memref<64x256xf32, #tpu.memory_space<vmem>>, vector<64x256xf32>
    %cst = arith.constant dense<0.000000e+00> : vector<528x256xf32>
    %6 = tpu.matmul %4, %5, %cst {dimension_numbers = #tpu.dot_dimension_numbers<[1], [0], [0], [1], [0, 0, 1, 1], [], []>} : vector<528x64xf32>, vector<64x256xf32>, vector<528x256xf32> -> vector<528x256xf32>
    %7 = vector.extract_strided_slice %6 {offsets = [0, 0], sizes = [528, 128], strides = [1, 1]} : vector<528x256xf32> to vector<528x128xf32>
    %8 = vector.extract_strided_slice %6 {offsets = [0, 128], sizes = [528, 128], strides = [1, 1]} : vector<528x256xf32> to vector<528x128xf32>
    %9 = arith.mulf %7, %7 : vector<528x128xf32>
    %10 = arith.mulf %8, %8 : vector<528x128xf32>
    %11 = arith.addf %9, %10 : vector<528x128xf32>
    %cst_5 = arith.constant 1.000000e-07 : f32
    %12 = vector.broadcast %cst_5 : f32 to vector<528x128xf32>
    %13 = arith.maximumf %11, %12 : vector<528x128xf32>
    %14 = math.sqrt %13 : vector<528x128xf32>
    %cst_6 = arith.constant 1.1920929E-7 : f32
    %15 = vector.broadcast %cst_6 : f32 to vector<528x128xf32>
    %16 = arith.addf %15, %14 : vector<528x128xf32>
    %17 = math.log %16 : vector<528x128xf32>
    %18 = vector.extract_strided_slice %14 {offsets = [0, 0], sizes = [264, 128], strides = [1, 1]} : vector<528x128xf32> to vector<264x128xf32>
    %19 = vector.extract_strided_slice %14 {offsets = [264, 0], sizes = [264, 128], strides = [1, 1]} : vector<528x128xf32> to vector<264x128xf32>
    %20 = arith.subf %19, %18 : vector<264x128xf32>
    %21 = vector.extract_strided_slice %17 {offsets = [264, 0], sizes = [264, 128], strides = [1, 1]} : vector<528x128xf32> to vector<264x128xf32>
    %22 = vector.extract_strided_slice %17 {offsets = [0, 0], sizes = [264, 128], strides = [1, 1]} : vector<528x128xf32> to vector<264x128xf32>
    %23 = arith.subf %21, %22 : vector<264x128xf32>
    %24 = math.absf %23 : vector<264x128xf32>
    %c0_7 = arith.constant 0 : index
    %c0_8 = arith.constant 0 : index
    %c0_9 = arith.constant 0 : index
    %25 = vector.load %arg4[%c0_7, %c0_8, %c0_9] : memref<1x24x128xf32, #tpu.memory_space<vmem>>, vector<1x8x128xf32>
    %26 = vector.shape_cast %25 : vector<1x8x128xf32> to vector<8x128xf32>
    %27 = arith.mulf %20, %20 : vector<264x128xf32>
    %28 = vector.shape_cast %27 : vector<264x128xf32> to vector<33x8x128xf32>
    %cst_10 = arith.constant dense<0.000000e+00> : vector<8x128xf32>
    %29 = vector.multi_reduction <add>, %28, %cst_10 [0] : vector<33x8x128xf32> to vector<8x128xf32>
    %30 = arith.addf %26, %29 : vector<8x128xf32>
    %c0_11 = arith.constant 0 : index
    %c0_12 = arith.constant 0 : index
    %c0_13 = arith.constant 0 : index
    %31 = vector.load %arg4[%c0_11, %c0_12, %c0_13] : memref<1x24x128xf32, #tpu.memory_space<vmem>>, vector<1x8x128xf32>
    %32 = vector.shape_cast %31 : vector<1x8x128xf32> to vector<8x128xf32>
    %33 = vector.shape_cast %30 : vector<8x128xf32> to vector<1x8x128xf32>
    tpu.vector_store %arg4[%c0_11, %c0_12, %c0_13], %33 {strides = array<i32>} : memref<1x24x128xf32, #tpu.memory_space<vmem>>, vector<1x8x128xf32>,
    %c0_14 = arith.constant 0 : index
    %c8 = arith.constant 8 : index
    %c0_15 = arith.constant 0 : index
    %34 = vector.load %arg4[%c0_14, %c8, %c0_15] : memref<1x24x128xf32, #tpu.memory_space<vmem>>, vector<1x8x128xf32>
    %35 = vector.shape_cast %34 : vector<1x8x128xf32> to vector<8x128xf32>
    %36 = arith.mulf %19, %19 : vector<264x128xf32>
    %37 = vector.shape_cast %36 : vector<264x128xf32> to vector<33x8x128xf32>
    %cst_16 = arith.constant dense<0.000000e+00> : vector<8x128xf32>
    %38 = vector.multi_reduction <add>, %37, %cst_16 [0] : vector<33x8x128xf32> to vector<8x128xf32>
    %39 = arith.addf %35, %38 : vector<8x128xf32>
    %c0_17 = arith.constant 0 : index
    %c8_18 = arith.constant 8 : index
    %c0_19 = arith.constant 0 : index
    %40 = vector.load %arg4[%c0_17, %c8_18, %c0_19] : memref<1x24x128xf32, #tpu.memory_space<vmem>>, vector<1x8x128xf32>
    %41 = vector.shape_cast %40 : vector<1x8x128xf32> to vector<8x128xf32>
    %42 = vector.shape_cast %39 : vector<8x128xf32> to vector<1x8x128xf32>
    tpu.vector_store %arg4[%c0_17, %c8_18, %c0_19], %42 {strides = array<i32>} : memref<1x24x128xf32, #tpu.memory_space<vmem>>, vector<1x8x128xf32>,
    %c0_20 = arith.constant 0 : index
    %c16 = arith.constant 16 : index
    %c0_21 = arith.constant 0 : index
    %43 = vector.load %arg4[%c0_20, %c16, %c0_21] : memref<1x24x128xf32, #tpu.memory_space<vmem>>, vector<1x8x128xf32>
    %44 = vector.shape_cast %43 : vector<1x8x128xf32> to vector<8x128xf32>
    %45 = vector.shape_cast %24 : vector<264x128xf32> to vector<33x8x128xf32>
    %cst_22 = arith.constant dense<0.000000e+00> : vector<8x128xf32>
    %46 = vector.multi_reduction <add>, %45, %cst_22 [0] : vector<33x8x128xf32> to vector<8x128xf32>
    %47 = arith.addf %44, %46 : vector<8x128xf32>
    %c0_23 = arith.constant 0 : index
    %c16_24 = arith.constant 16 : index
    %c0_25 = arith.constant 0 : index
    %48 = vector.load %arg4[%c0_23, %c16_24, %c0_25] : memref<1x24x128xf32, #tpu.memory_space<vmem>>, vector<1x8x128xf32>
    %49 = vector.shape_cast %48 : vector<1x8x128xf32> to vector<8x128xf32>
    %50 = vector.shape_cast %47 : vector<8x128xf32> to vector<1x8x128xf32>
    tpu.vector_store %arg4[%c0_23, %c16_24, %c0_25], %50 {strides = array<i32>} : memref<1x24x128xf32, #tpu.memory_space<vmem>>, vector<1x8x128xf32>,
    return
  }
  func.func @transform_0(%arg0: i32, %arg1: i32) -> (i32, i32, i32) {
    %c1_i32 = arith.constant 1 : i32
    %0 = arith.muli %arg0, %c1_i32 : i32
    %1 = arith.addi %0, %arg1 : i32
    %c0_i32 = arith.constant 0 : i32
    %c0_i32_0 = arith.constant 0 : i32
    %c0_i32_1 = arith.constant 0 : i32
    return %c0_i32, %1, %c0_i32_0 : i32, i32, i32
  }
  func.func @transform_1(%arg0: i32, %arg1: i32) -> (i32, i32) {
    %c0_i32 = arith.constant 0 : i32
    %c0_i32_0 = arith.constant 0 : i32
    %c0_i32_1 = arith.constant 0 : i32
    return %c0_i32, %c0_i32_0 : i32, i32
  }
  func.func @transform_2(%arg0: i32, %arg1: i32) -> (i32, i32, i32) {
    %c0_i32 = arith.constant 0 : i32
    %c0_i32_0 = arith.constant 0 : i32
    %c0_i32_1 = arith.constant 0 : i32
    return %arg0, %c0_i32, %c0_i32_0 : i32, i32, i32
  }
}

</mosaic_0001>

<llo_original>
// kernel: stft_loss.1
$region0: #{stft_loss.1}
  #allocation0 [shape = 'u32[]', space=smem, size = 0x4, offset = 0x4, fixed_abs, tag = 'smem constant byte address 0x4 - core index']
  #allocation1 [shape = 'u32[144,128]{1,0:T(1,128)}', space=vmem, size = 0x12000, scoped, tag = 'internal scratch']
  %s0 = inlined_call_operand.vmem [shape: f32[2,264,64], index: 0, kind: input, shape index: {}]
  %s1 = inlined_call_operand.vmem [shape: f32[64,256], index: 1, kind: input, shape index: {}]
  %s2 = inlined_call_operand.vmem [shape: f32[1,24,128], index: 2, kind: output, shape index: {}]
  %s3 = sld [smem:[#allocation0]]
  $region22: #{stft_loss.1} parent=0
    _
  %s5 = ssub.s32 1, %s3
  %s6 = scalar_select 0, %s5, %s3
  // Predicated region
  $region2: #{stft_loss.1} parent=0 // pred_check
    _
  $region3: #{stft_loss.1} parent=0 // pred_check_branch
    %8 = sbr.rel (0) target = $region5
  $region4: #{stft_loss.1} parent=0 // pred_region
    %s9 = sadd.s32 0, 0
    %s10 = smul.u32 33, %s9
    %p11 = scmp.lt.s32.totalorder %s10, 32
    %s12 = scalar_select %p11, %s10, 32
    %s13 = smul.addr %s12, 8
    %s14 = scalar_lea.vmem %s0, %s13
    %s15 = sadd.s32 0, 0
    %s16 = smul.u32 33, %s15
  $region5: #{stft_loss.1} parent=0 // pred_fallthru
    _
  // Predicated region
  $region6: #{stft_loss.1} parent=0 // pred_check
    _
  $region7: #{stft_loss.1} parent=0 // pred_check_branch
    %18 = sbr.rel (0) target = $region9
  $region8: #{stft_loss.1} parent=0 // pred_region
    _
  $region9: #{stft_loss.1} parent=0 // pred_fallthru
    _
  %s19 = sadd.s32 0, 0
  %s20 = smul.u32 33, %s19
  %p21 = scmp.lt.s32.totalorder %s20, 32
  %s22 = scalar_select %p21, %s20, 32
  %s23 = smul.addr %s22, 8
  %s24 = scalar_lea.vmem %s0, %s23
  %s25 = sadd.s32 0, 0
  %s26 = smul.u32 33, %s25
  %p27 = scmp.lt.s32.totalorder %s26, 32
  %s28 = scalar_select %p27, %s26, 32
  %s29 = smul.addr %s28, 8
  %s30 = scalar_lea.vmem %s0, %s29
  %s31 = sadd.s32 0, 0
  %s32 = smul.u32 33, %s31
  %p33 = scmp.eq.s32.totalorder 0, 0
  // Predicated region
  $region10: #{stft_loss.1} parent=0 // pred_check
    %p34 = pneg %p33
  $region11: #{stft_loss.1} parent=0 // pred_check_branch
    %36 = sbr.rel (%p34) target = $region13
  $region12: #{stft_loss.1} parent=0 // pred_region
    %37 = vst [vmem:[%s2] sm:$0xff] 0.0
    %38 = vst [vmem:[%s2 + $0x8] sm:$0xff] 0.0
    %39 = vst [vmem:[%s2 + $0x10] sm:$0xff] 0.0
  $region13: #{stft_loss.1} parent=0 // pred_fallthru
    _
  %v40 = vld [vmem:[%s30] sm:$0xff]
  %v41 = vld [vmem:[%s30 + $0x8] sm:$0xff]
  %v42 = vld [vmem:[%s30 + $0x10] sm:$0xff]
  %v43 = vld [vmem:[%s30 + $0x18] sm:$0xff]
  %v44 = vld [vmem:[%s30 + $0x20] sm:$0xff]
  %v45 = vld [vmem:[%s30 + $0x28] sm:$0xff]
  %v46 = vld [vmem:[%s30 + $0x30] sm:$0xff]
  %v47 = vld [vmem:[%s30 + $0x38] sm:$0xff]
  %v48 = vld [vmem:[%s30 + $0x40] sm:$0xff]
  %v49 = vld [vmem:[%s30 + $0x48] sm:$0xff]
  %v50 = vld [vmem:[%s30 + $0x50] sm:$0xff]
  %v51 = vld [vmem:[%s30 + $0x58] sm:$0xff]
  %v52 = vld [vmem:[%s30 + $0x60] sm:$0xff]
  %v53 = vld [vmem:[%s30 + $0x68] sm:$0xff]
  %v54 = vld [vmem:[%s30 + $0x70] sm:$0xff]
  %v55 = vld [vmem:[%s30 + $0x78] sm:$0xff]
  %v56 = vld [vmem:[%s30 + $0x80] sm:$0xff]
  %v57 = vld [vmem:[%s30 + $0x88] sm:$0xff]
  %v58 = vld [vmem:[%s30 + $0x90] sm:$0xff]
  %v59 = vld [vmem:[%s30 + $0x98] sm:$0xff]
  %v60 = vld [vmem:[%s30 + $0xa0] sm:$0xff]
  %v61 = vld [vmem:[%s30 + $0xa8] sm:$0xff]
  %v62 = vld [vmem:[%s30 + $0xb0] sm:$0xff]
  %v63 = vld [vmem:[%s30 + $0xb8] sm:$0xff]
  %v64 = vld [vmem:[%s30 + $0xc0] sm:$0xff]
  %v65 = vld [vmem:[%s30 + $0xc8] sm:$0xff]
  %v66 = vld [vmem:[%s30 + $0xd0] sm:$0xff]
  %v67 = vld [vmem:[%s30 + $0xd8] sm:$0xff]
  %v68 = vld [vmem:[%s30 + $0xe0] sm:$0xff]
  %v69 = vld [vmem:[%s30 + $0xe8] sm:$0xff]
  %v70 = vld [vmem:[%s30 + $0xf0] sm:$0xff]
  %v71 = vld [vmem:[%s30 + $0xf8] sm:$0xff]
  %v72 = vld [vmem:[%s30 + $0x100] sm:$0xff]
  %v73 = vld [vmem:[%s30 + $0x108] sm:$0xff]
  %v74 = vld [vmem:[%s30 + $0x110] sm:$0xff]
  %v75 = vld [vmem:[%s30 + $0x118] sm:$0xff]
  %v76 = vld [vmem:[%s30 + $0x120] sm:$0xff]
  %v77 = vld [vmem:[%s30 + $0x128] sm:$0xff]
  %v78 = vld [vmem:[%s30 + $0x130] sm:$0xff]
  %v79 = vld [vmem:[%s30 + $0x138] sm:$0xff]
  %v80 = vld [vmem:[%s30 + $0x140] sm:$0xff]
  %v81 = vld [vmem:[%s30 + $0x148] sm:$0xff]
  %v82 = vld [vmem:[%s30 + $0x150] sm:$0xff]
  %v83 = vld [vmem:[%s30 + $0x158] sm:$0xff]
  %v84 = vld [vmem:[%s30 + $0x160] sm:$0xff]
  %v85 = vld [vmem:[%s30 + $0x168] sm:$0xff]
  %v86 = vld [vmem:[%s30 + $0x170] sm:$0xff]
  %v87 = vld [vmem:[%s30 + $0x178] sm:$0xff]
  %v88 = vld [vmem:[%s30 + $0x180] sm:$0xff]
  %v89 = vld [vmem:[%s30 + $0x188] sm:$0xff]
  %v90 = vld [vmem:[%s30 + $0x190] sm:$0xff]
  %v91 = vld [vmem:[%s30 + $0x198] sm:$0xff]
  %v92 = vld [vmem:[%s30 + $0x1a0] sm:$0xff]
  %v93 = vld [vmem:[%s30 + $0x1a8] sm:$0xff]
  %v94 = vld [vmem:[%s30 + $0x1b0] sm:$0xff]
  %v95 = vld [vmem:[%s30 + $0x1b8] sm:$0xff]
  %v96 = vld [vmem:[%s30 + $0x1c0] sm:$0xff]
  %v97 = vld [vmem:[%s30 + $0x1c8] sm:$0xff]
  %v98 = vld [vmem:[%s30 + $0x1d0] sm:$0xff]
  %v99 = vld [vmem:[%s30 + $0x1d8] sm:$0xff]
  %v100 = vld [vmem:[%s30 + $0x1e0] sm:$0xff]
  %v101 = vld [vmem:[%s30 + $0x1e8] sm:$0xff]
  %v102 = vld [vmem:[%s30 + $0x1f0] sm:$0xff]
  %v103 = vld [vmem:[%s30 + $0x1f8] sm:$0xff]
  %v104 = vld [vmem:[%s30 + $0x200] sm:$0xff]
  %v105 = vld [vmem:[%s30 + $0x208] sm:$0xff]
  %v106 = vld [vmem:[%s1] sm:$0xff]
  %v107 = vld [vmem:[%s1 + $0x8] sm:$0xff]
  %v108 = vld [vmem:[%s1 + $0x10] sm:$0xff]
  %v109 = vld [vmem:[%s1 + $0x18] sm:$0xff]
  %v110 = vld [vmem:[%s1 + $0x20] sm:$0xff]
  %v111 = vld [vmem:[%s1 + $0x28] sm:$0xff]
  %v112 = vld [vmem:[%s1 + $0x30] sm:$0xff]
  %v113 = vld [vmem:[%s1 + $0x38] sm:$0xff]
  %v114 = vld [vmem:[%s1 + $0x40] sm:$0xff]
  %v115 = vld [vmem:[%s1 + $0x48] sm:$0xff]
  %v116 = vld [vmem:[%s1 + $0x50] sm:$0xff]
  %v117 = vld [vmem:[%s1 + $0x58] sm:$0xff]
  %v118 = vld [vmem:[%s1 + $0x60] sm:$0xff]
  %v119 = vld [vmem:[%s1 + $0x68] sm:$0xff]
  %v120 = vld [vmem:[%s1 + $0x70] sm:$0xff]
  %v121 = vld [vmem:[%s1 + $0x78] sm:$0xff]
  %vm122 = vcmask 523264
  %v124 = vsel %vm122, %v40, 0
  %v127 = vsel %vm122, %v41, 0
  %v130 = vsel %vm122, %v42, 0
  %v133 = vsel %vm122, %v43, 0
  %v136 = vsel %vm122, %v44, 0
  %v139 = vsel %vm122, %v45, 0
  %v142 = vsel %vm122, %v46, 0
  %v145 = vsel %vm122, %v47, 0
  %v148 = vsel %vm122, %v48, 0
  %v151 = vsel %vm122, %v49, 0
  %v154 = vsel %vm122, %v50, 0
  %v157 = vsel %vm122, %v51, 0
  %v160 = vsel %vm122, %v52, 0
  %v163 = vsel %vm122, %v53, 0
  %v166 = vsel %vm122, %v54, 0
  %v169 = vsel %vm122, %v55, 0
  %v172 = vsel %vm122, %v56, 0
  %v175 = vsel %vm122, %v57, 0
  %v178 = vsel %vm122, %v58, 0
  %v181 = vsel %vm122, %v59, 0
  %v184 = vsel %vm122, %v60, 0
  %v187 = vsel %vm122, %v61, 0
  %v190 = vsel %vm122, %v62, 0
  %v193 = vsel %vm122, %v63, 0
  %v196 = vsel %vm122, %v64, 0
  %v199 = vsel %vm122, %v65, 0
  %v202 = vsel %vm122, %v66, 0
  %v205 = vsel %vm122, %v67, 0
  %v208 = vsel %vm122, %v68, 0
  %v211 = vsel %vm122, %v69, 0
  %v214 = vsel %vm122, %v70, 0
  %v217 = vsel %vm122, %v71, 0
  %v220 = vsel %vm122, %v72, 0
  %v223 = vsel %vm122, %v73, 0
  %v226 = vsel %vm122, %v74, 0
  %v229 = vsel %vm122, %v75, 0
  %v232 = vsel %vm122, %v76, 0
  %v235 = vsel %vm122, %v77, 0
  %v238 = vsel %vm122, %v78, 0
  %v241 = vsel %vm122, %v79, 0
  %v244 = vsel %vm122, %v80, 0
  %v247 = vsel %vm122, %v81, 0
  %v250 = vsel %vm122, %v82, 0
  %v253 = vsel %vm122, %v83, 0
  %v256 = vsel %vm122, %v84, 0
  %v259 = vsel %vm122, %v85, 0
  %v262 = vsel %vm122, %v86, 0
  %v265 = vsel %vm122, %v87, 0
  %v268 = vsel %vm122, %v88, 0
  %v271 = vsel %vm122, %v89, 0
  %v274 = vsel %vm122, %v90, 0
  %v277 = vsel %vm122, %v91, 0
  %v280 = vsel %vm122, %v92, 0
  %v283 = vsel %vm122, %v93, 0
  %v286 = vsel %vm122, %v94, 0
  %v289 = vsel %vm122, %v95, 0
  %v292 = vsel %vm122, %v96, 0
  %v295 = vsel %vm122, %v97, 0
  %v298 = vsel %vm122, %v98, 0
  %v301 = vsel %vm122, %v99, 0
  %v304 = vsel %vm122, %v100, 0
  %v307 = vsel %vm122, %v101, 0
  %v310 = vsel %vm122, %v102, 0
  %v313 = vsel %vm122, %v103, 0
  %v316 = vsel %vm122, %v104, 0
  %v319 = vsel %vm122, %v105, 0
  %321 = vmatprep.subr.mxu0 %v107
  %322 = vmatpush1.msra.mxu0 %v106
  %323 = vmatprep.subr.mxu0 %v109
  %324 = vmatpush1.msra.mxu0 %v108
  %325 = vmatprep.subr.mxu0 %v111
  %326 = vmatpush1.msra.mxu0 %v110
  %327 = vmatprep.subr.mxu0 %v113
  %328 = vmatpush1.msra.mxu0 %v112
  %329 = vmatprep.subr.mxu0 %v115
  %330 = vmatpush1.msra.mxu0 %v114
  %331 = vmatprep.subr.mxu0 %v117
  %332 = vmatpush1.msra.mxu0 %v116
  %333 = vmatprep.subr.mxu0 %v119
  %334 = vmatpush1.msra.mxu0 %v118
  %335 = vmatprep.subr.mxu0 %v121
  %336 = vmatpush1.msra.mxu0 %v120
  %337 = vmatprep.subr.mxu0 0.0
  %338 = vmatpush1.msra.mxu0 0.0
  %339 = vmatprep.subr.mxu0 0.0
  %340 = vmatpush1.msra.mxu0 0.0
  %341 = vmatprep.subr.mxu0 0.0
  %342 = vmatpush1.msra.mxu0 0.0
  %343 = vmatprep.subr.mxu0 0.0
  %344 = vmatpush1.msra.mxu0 0.0
  %345 = vmatprep.subr.mxu0 0.0
  %346 = vmatpush1.msra.mxu0 0.0
  %347 = vmatprep.subr.mxu0 0.0
  %348 = vmatpush1.msra.mxu0 0.0
  %349 = vmatprep.subr.mxu0 0.0
  %350 = vmatpush1.msra.mxu0 0.0
  %351 = vmatprep.subr.mxu0 0.0
  %352 = vmatpush1.msra.mxu0 0.0
  %353 = vmatprep.subr.mxu0 0.0
  %354 = vmatpush1.msra.mxu0 0.0
  %355 = vmatprep.subr.mxu0 0.0
  %356 = vmatpush1.msra.mxu0 0.0
  %357 = vmatprep.subr.mxu0 0.0
  %358 = vmatpush1.msra.mxu0 0.0
  %359 = vmatprep.subr.mxu0 0.0
  %360 = vmatpush1.msra.mxu0 0.0
  %361 = vmatprep.subr.mxu0 0.0
  %362 = vmatpush1.msra.mxu0 0.0
  %363 = vmatprep.subr.mxu0 0.0
  %364 = vmatpush1.msra.mxu0 0.0
  %365 = vmatprep.subr.mxu0 0.0
  %366 = vmatpush1.msra.mxu0 0.0
  %367 = vmatprep.subr.mxu0 0.0
  %368 = vmatpush1.msra.mxu0 0.0
  %369 = vmatprep.subr.mxu0 0.0
  %370 = vmatpush1.msra.mxu0 0.0
  %371 = vmatprep.subr.mxu0 0.0
  %372 = vmatpush1.msra.mxu0 0.0
  %373 = vmatprep.subr.mxu0 0.0
  %374 = vmatpush1.msra.mxu0 0.0
  %375 = vmatprep.subr.mxu0 0.0
  %376 = vmatpush1.msra.mxu0 0.0
  %377 = vmatprep.subr.mxu0 0.0
  %378 = vmatpush1.msra.mxu0 0.0
  %379 = vmatprep.subr.mxu0 0.0
  %380 = vmatpush1.msra.mxu0 0.0
  %381 = vmatprep.subr.mxu0 0.0
  %382 = vmatpush1.msra.mxu0 0.0
  %383 = vmatprep.subr.mxu0 0.0
  %384 = vmatpush1.msra.mxu0 0.0
  %385 = vmatprep.mubr.f32.mxu0 0.0
  %386 = vmatmul.mubr.f32.gmra.mrb[0].mxu0 %v124
  %v387 = vpop.f32.mrb[0].mxu0
  %v388 = vadd.f32 0.0, %v387
  %v389 = vpop.f32.mrb[0].mxu0
  %v390 = vadd.f32 0.0, %v389
  %391 = vmatprep.mubr.f32.mxu0 0.0
  %392 = vmatmul.mubr.f32.gmra.mrb[0].mxu0 %v127
  %v393 = vpop.f32.mrb[0].mxu0
  %v394 = vadd.f32 0.0, %v393
  %v395 = vpop.f32.mrb[0].mxu0
  %v396 = vadd.f32 0.0, %v395
  %397 = vmatprep.mubr.f32.mxu0 0.0
  %398 = vmatmul.mubr.f32.gmra.mrb[0].mxu0 %v130
  %v399 = vpop.f32.mrb[0].mxu0
  %v400 = vadd.f32 0.0, %v399
  %v401 = vpop.f32.mrb[0].mxu0
  %v402 = vadd.f32 0.0, %v401
  %403 = vmatprep.mubr.f32.mxu0 0.0
  %404 = vmatmul.mubr.f32.gmra.mrb[0].mxu0 %v133
  %v405 = vpop.f32.mrb[0].mxu0
  %v406 = vadd.f32 0.0, %v405
  %v407 = vpop.f32.mrb[0].mxu0
  %v408 = vadd.f32 0.0, %v407
  %409 = vmatprep.mubr.f32.mxu0 0.0
  %410 = vmatmul.mubr.f32.gmra.mrb[0].mxu0 %v136
  %v411 = vpop.f32.mrb[0].mxu0
  %v412 = vadd.f32 0.0, %v411
  %v413 = vpop.f32.mrb[0].mxu0
  %v414 = vadd.f32 0.0, %v413
  %415 = vmatprep.mubr.f32.mxu0 0.0
  %416 = vmatmul.mubr.f32.gmra.mrb[0].mxu0 %v139
  %v417 = vpop.f32.mrb[0].mxu0
  %v418 = vadd.f32 0.0, %v417
  %v419 = vpop.f32.mrb[0].mxu0
  %v420 = vadd.f32 0.0, %v419
  %421 = vmatprep.mubr.f32.mxu0 0.0
  %422 = vmatmul.mubr.f32.gmra.mrb[0].mxu0 %v142
  %v423 = vpop.f32.mrb[0].mxu0
  %v424 = vadd.f32 0.0, %v423
  %v425 = vpop.f32.mrb[0].mxu0
  %v426 = vadd.f32 0.0, %v425
  %427 = vmatprep.mubr.f32.mxu0 0.0
  %428 = vmatmul.mubr.f32.gmra.mrb[0].mxu0 %v145
  %v429 = vpop.f32.mrb[0].mxu0
  %v430 = vadd.f32 0.0, %v429
  %v431 = vpop.f32.mrb[0].mxu0
  %v432 = vadd.f32 0.0, %v431
  %433 = vmatprep.mubr.f32.mxu0 0.0
  %434 = vmatmul.mubr.f32.gmra.mrb[0].mxu0 %v148
  %v435 = vpop.f32.mrb[0].mxu0
  %v436 = vadd.f32 0.0, %v435
  %v437 = vpop.f32.mrb[0].mxu0
  %v438 = vadd.f32 0.0, %v437
  %439 = vmatprep.mubr.f32.mxu0 0.0
  %440 = vmatmul.mubr.f32.gmra.mrb[0].mxu0 %v151
  %v441 = vpop.f32.mrb[0].mxu0
  %v442 = vadd.f32 0.0, %v441
  %v443 = vpop.f32.mrb[0].mxu0
  %v444 = vadd.f32 0.0, %v443
  %445 = vmatprep.mubr.f32.mxu0 0.0
  %446 = vmatmul.mubr.f32.gmra.mrb[0].mxu0 %v154
  %v447 = vpop.f32.mrb[0].mxu0
  %v448 = vadd.f32 0.0, %v447
  %v449 = vpop.f32.mrb[0].mxu0
  %v450 = vadd.f32 0.0, %v449
  %451 = vmatprep.mubr.f32.mxu0 0.0
  %452 = vmatmul.mubr.f32.gmra.mrb[0].mxu0 %v157
  %v453 = vpop.f32.mrb[0].mxu0
  %v454 = vadd.f32 0.0, %v453
  %v455 = vpop.f32.mrb[0].mxu0
  %v456 = vadd.f32 0.0, %v455
  %457 = vmatprep.mubr.f32.mxu0 0.0
  %458 = vmatmul.mubr.f32.gmra.mrb[0].mxu0 %v160
  %v459 = vpop.f32.mrb[0].mxu0
  %v460 = vadd.f32 0.0, %v459
  %v461 = vpop.f32.mrb[0].mxu0
  %v462 = vadd.f32 0.0, %v461
  %463 = vmatprep.mubr.f32.mxu0 0.0
  %464 = vmatmul.mubr.f32.gmra.mrb[0].mxu0 %v163
  %v465 = vpop.f32.mrb[0].mxu0
  %v466 = vadd.f32 0.0, %v465
  %v467 = vpop.f32.mrb[0].mxu0
  %v468 = vadd.f32 0.0, %v467
  %469 = vmatprep.mubr.f32.mxu0 0.0
  %470 = vmatmul.mubr.f32.gmra.mrb[0].mxu0 %v166
  %v471 = vpop.f32.mrb[0].mxu0
  %v472 = vadd.f32 0.0, %v471
  %v473 = vpop.f32.mrb[0].mxu0
  %v474 = vadd.f32 0.0, %v473
  %475 = vmatprep.mubr.f32.mxu0 0.0
  %476 = vmatmul.mubr.f32.gmra.mrb[0].mxu0 %v169
  %v477 = vpop.f32.mrb[0].mxu0
  %v478 = vadd.f32 0.0, %v477
  %v479 = vpop.f32.mrb[0].mxu0
  %v480 = vadd.f32 0.0, %v479
  %481 = vmatprep.mubr.f32.mxu0 0.0
  %482 = vmatmul.mubr.f32.gmra.mrb[0].mxu0 %v172
  %v483 = vpop.f32.mrb[0].mxu0
  %v484 = vadd.f32 0.0, %v483
  %v485 = vpop.f32.mrb[0].mxu0
  %v486 = vadd.f32 0.0, %v485
  %487 = vmatprep.mubr.f32.mxu0 0.0
  %488 = vmatmul.mubr.f32.gmra.mrb[0].mxu0 %v175
  %v489 = vpop.f32.mrb[0].mxu0
  %v490 = vadd.f32 0.0, %v489
  %v491 = vpop.f32.mrb[0].mxu0
  %v492 = vadd.f32 0.0, %v491
  %493 = vmatprep.mubr.f32.mxu0 0.0
  %494 = vmatmul.mubr.f32.gmra.mrb[0].mxu0 %v178
  %v495 = vpop.f32.mrb[0].mxu0
  %v496 = vadd.f32 0.0, %v495
  %v497 = vpop.f32.mrb[0].mxu0
  %v498 = vadd.f32 0.0, %v497
  %499 = vmatprep.mubr.f32.mxu0 0.0
  %500 = vmatmul.mubr.f32.gmra.mrb[0].mxu0 %v181
  %v501 = vpop.f32.mrb[0].mxu0
  %v502 = vadd.f32 0.0, %v501
  %v503 = vpop.f32.mrb[0].mxu0
  %v504 = vadd.f32 0.0, %v503
  %505 = vmatprep.mubr.f32.mxu0 0.0
  %506 = vmatmul.mubr.f32.gmra.mrb[0].mxu0 %v184
  %v507 = vpop.f32.mrb[0].mxu0
  %v508 = vadd.f32 0.0, %v507
  %v509 = vpop.f32.mrb[0].mxu0
  %v510 = vadd.f32 0.0, %v509
  %511 = vmatprep.mubr.f32.mxu0 0.0
  %512 = vmatmul.mubr.f32.gmra.mrb[0].mxu0 %v187
  %v513 = vpop.f32.mrb[0].mxu0
  %v514 = vadd.f32 0.0, %v513
  %v515 = vpop.f32.mrb[0].mxu0
  %v516 = vadd.f32 0.0, %v515
  %517 = vmatprep.mubr.f32.mxu0 0.0
  %518 = vmatmul.mubr.f32.gmra.mrb[0].mxu0 %v190
  %v519 = vpop.f32.mrb[0].mxu0
  %v520 = vadd.f32 0.0, %v519
  %v521 = vpop.f32.mrb[0].mxu0
  %v522 = vadd.f32 0.0, %v521
  %523 = vmatprep.mubr.f32.mxu0 0.0
  %524 = vmatmul.mubr.f32.gmra.mrb[0].mxu0 %v193
  %v525 = vpop.f32.mrb[0].mxu0
  %v526 = vadd.f32 0.0, %v525
  %v527 = vpop.f32.mrb[0].mxu0
  %v528 = vadd.f32 0.0, %v527
  %529 = vmatprep.mubr.f32.mxu0 0.0
  %530 = vmatmul.mubr.f32.gmra.mrb[0].mxu0 %v196
  %v531 = vpop.f32.mrb[0].mxu0
  %v532 = vadd.f32 0.0, %v531
  %v533 = vpop.f32.mrb[0].mxu0
  %v534 = vadd.f32 0.0, %v533
  %535 = vmatprep.mubr.f32.mxu0 0.0
  %536 = vmatmul.mubr.f32.gmra.mrb[0].mxu0 %v199
  %v537 = vpop.f32.mrb[0].mxu0
  %v538 = vadd.f32 0.0, %v537
  %v539 = vpop.f32.mrb[0].mxu0
  %v540 = vadd.f32 0.0, %v539
  %541 = vmatprep.mubr.f32.mxu0 0.0
  %542 = vmatmul.mubr.f32.gmra.mrb[0].mxu0 %v202
  %v543 = vpop.f32.mrb[0].mxu0
  %v544 = vadd.f32 0.0, %v543
  %v545 = vpop.f32.mrb[0].mxu0
  %v546 = vadd.f32 0.0, %v545
  %547 = vmatprep.mubr.f32.mxu0 0.0
  %548 = vmatmul.mubr.f32.gmra.mrb[0].mxu0 %v205
  %v549 = vpop.f32.mrb[0].mxu0
  %v550 = vadd.f32 0.0, %v549
  %v551 = vpop.f32.mrb[0].mxu0
  %v552 = vadd.f32 0.0, %v551
  %553 = vmatprep.mubr.f32.mxu0 0.0
  %554 = vmatmul.mubr.f32.gmra.mrb[0].mxu0 %v208
  %v555 = vpop.f32.mrb[0].mxu0
  %v556 = vadd.f32 0.0, %v555
  %v557 = vpop.f32.mrb[0].mxu0
  %v558 = vadd.f32 0.0, %v557
  %559 = vmatprep.mubr.f32.mxu0 0.0
  %560 = vmatmul.mubr.f32.gmra.mrb[0].mxu0 %v211
  %v561 = vpop.f32.mrb[0].mxu0
  %v562 = vadd.f32 0.0, %v561
  %v563 = vpop.f32.mrb[0].mxu0
  %v564 = vadd.f32 0.0, %v563
  %565 = vmatprep.mubr.f32.mxu0 0.0
  %566 = vmatmul.mubr.f32.gmra.mrb[0].mxu0 %v214
  %v567 = vpop.f32.mrb[0].mxu0
  %v568 = vadd.f32 0.0, %v567
  %v569 = vpop.f32.mrb[0].mxu0
  %v570 = vadd.f32 0.0, %v569
  %571 = vmatprep.mubr.f32.mxu0 0.0
  %572 = vmatmul.mubr.f32.gmra.mrb[0].mxu0 %v217
  %v573 = vpop.f32.mrb[0].mxu0
  %v574 = vadd.f32 0.0, %v573
  %v575 = vpop.f32.mrb[0].mxu0
  %v576 = vadd.f32 0.0, %v575
  %577 = vmatprep.mubr.f32.mxu0 0.0
  %578 = vmatmul.mubr.f32.gmra.mrb[0].mxu0 %v220
  %v579 = vpop.f32.mrb[0].mxu0
  %v580 = vadd.f32 0.0, %v579
  %v581 = vpop.f32.mrb[0].mxu0
  %v582 = vadd.f32 0.0, %v581
  %583 = vmatprep.mubr.f32.mxu0 0.0
  %584 = vmatmul.mubr.f32.gmra.mrb[0].mxu0 %v223
  %v585 = vpop.f32.mrb[0].mxu0
  %v586 = vadd.f32 0.0, %v585
  %v587 = vpop.f32.mrb[0].mxu0
  %v588 = vadd.f32 0.0, %v587
  %589 = vmatprep.mubr.f32.mxu0 0.0
  %590 = vmatmul.mubr.f32.gmra.mrb[0].mxu0 %v226
  %v591 = vpop.f32.mrb[0].mxu0
  %v592 = vadd.f32 0.0, %v591
  %v593 = vpop.f32.mrb[0].mxu0
  %v594 = vadd.f32 0.0, %v593
  %595 = vmatprep.mubr.f32.mxu0 0.0
  %596 = vmatmul.mubr.f32.gmra.mrb[0].mxu0 %v229
  %v597 = vpop.f32.mrb[0].mxu0
  %v598 = vadd.f32 0.0, %v597
  %v599 = vpop.f32.mrb[0].mxu0
  %v600 = vadd.f32 0.0, %v599
  %601 = vmatprep.mubr.f32.mxu0 0.0
  %602 = vmatmul.mubr.f32.gmra.mrb[0].mxu0 %v232
  %v603 = vpop.f32.mrb[0].mxu0
  %v604 = vadd.f32 0.0, %v603
  %v605 = vpop.f32.mrb[0].mxu0
  %v606 = vadd.f32 0.0, %v605
  %607 = vmatprep.mubr.f32.mxu0 0.0
  %608 = vmatmul.mubr.f32.gmra.mrb[0].mxu0 %v235
  %v609 = vpop.f32.mrb[0].mxu0
  %v610 = vadd.f32 0.0, %v609
  %v611 = vpop.f32.mrb[0].mxu0
  %v612 = vadd.f32 0.0, %v611
  %613 = vmatprep.mubr.f32.mxu0 0.0
  %614 = vmatmul.mubr.f32.gmra.mrb[0].mxu0 %v238
  %v615 = vpop.f32.mrb[0].mxu0
  %v616 = vadd.f32 0.0, %v615
  %v617 = vpop.f32.mrb[0].mxu0
  %v618 = vadd.f32 0.0, %v617
  %619 = vmatprep.mubr.f32.mxu0 0.0
  %620 = vmatmul.mubr.f32.gmra.mrb[0].mxu0 %v241
  %v621 = vpop.f32.mrb[0].mxu0
  %v622 = vadd.f32 0.0, %v621
  %v623 = vpop.f32.mrb[0].mxu0
  %v624 = vadd.f32 0.0, %v623
  %625 = vmatprep.mubr.f32.mxu0 0.0
  %626 = vmatmul.mubr.f32.gmra.mrb[0].mxu0 %v244
  %v627 = vpop.f32.mrb[0].mxu0
  %v628 = vadd.f32 0.0, %v627
  %v629 = vpop.f32.mrb[0].mxu0
  %v630 = vadd.f32 0.0, %v629
  %631 = vmatprep.mubr.f32.mxu0 0.0
  %632 = vmatmul.mubr.f32.gmra.mrb[0].mxu0 %v247
  %v633 = vpop.f32.mrb[0].mxu0
  %v634 = vadd.f32 0.0, %v633
  %v635 = vpop.f32.mrb[0].mxu0
  %v636 = vadd.f32 0.0, %v635
  %637 = vmatprep.mubr.f32.mxu0 0.0
  %638 = vmatmul.mubr.f32.gmra.mrb[0].mxu0 %v250
  %v639 = vpop.f32.mrb[0].mxu0
  %v640 = vadd.f32 0.0, %v639
  %v641 = vpop.f32.mrb[0].mxu0
  %v642 = vadd.f32 0.0, %v641
  %643 = vmatprep.mubr.f32.mxu0 0.0
  %644 = vmatmul.mubr.f32.gmra.mrb[0].mxu0 %v253
  %v645 = vpop.f32.mrb[0].mxu0
  %v646 = vadd.f32 0.0, %v645
  %v647 = vpop.f32.mrb[0].mxu0
  %v648 = vadd.f32 0.0, %v647
  %649 = vmatprep.mubr.f32.mxu0 0.0
  %650 = vmatmul.mubr.f32.gmra.mrb[0].mxu0 %v256
  %v651 = vpop.f32.mrb[0].mxu0
  %v652 = vadd.f32 0.0, %v651
  %v653 = vpop.f32.mrb[0].mxu0
  %v654 = vadd.f32 0.0, %v653
  %655 = vmatprep.mubr.f32.mxu0 0.0
  %656 = vmatmul.mubr.f32.gmra.mrb[0].mxu0 %v259
  %v657 = vpop.f32.mrb[0].mxu0
  %v658 = vadd.f32 0.0, %v657
  %v659 = vpop.f32.mrb[0].mxu0
  %v660 = vadd.f32 0.0, %v659
  %661 = vmatprep.mubr.f32.mxu0 0.0
  %662 = vmatmul.mubr.f32.gmra.mrb[0].mxu0 %v262
  %v663 = vpop.f32.mrb[0].mxu0
  %v664 = vadd.f32 0.0, %v663
  %v665 = vpop.f32.mrb[0].mxu0
  %v666 = vadd.f32 0.0, %v665
  %667 = vmatprep.mubr.f32.mxu0 0.0
  %668 = vmatmul.mubr.f32.gmra.mrb[0].mxu0 %v265
  %v669 = vpop.f32.mrb[0].mxu0
  %v670 = vadd.f32 0.0, %v669
  %v671 = vpop.f32.mrb[0].mxu0
  %v672 = vadd.f32 0.0, %v671
  %673 = vmatprep.mubr.f32.mxu0 0.0
  %674 = vmatmul.mubr.f32.gmra.mrb[0].mxu0 %v268
  %v675 = vpop.f32.mrb[0].mxu0
  %v676 = vadd.f32 0.0, %v675
  %v677 = vpop.f32.mrb[0].mxu0
  %v678 = vadd.f32 0.0, %v677
  %679 = vmatprep.mubr.f32.mxu0 0.0
  %680 = vmatmul.mubr.f32.gmra.mrb[0].mxu0 %v271
  %v681 = vpop.f32.mrb[0].mxu0
  %v682 = vadd.f32 0.0, %v681
  %v683 = vpop.f32.mrb[0].mxu0
  %v684 = vadd.f32 0.0, %v683
  %685 = vmatprep.mubr.f32.mxu0 0.0
  %686 = vmatmul.mubr.f32.gmra.mrb[0].mxu0 %v274
  %v687 = vpop.f32.mrb[0].mxu0
  %v688 = vadd.f32 0.0, %v687
  %v689 = vpop.f32.mrb[0].mxu0
  %v690 = vadd.f32 0.0, %v689
  %691 = vmatprep.mubr.f32.mxu0 0.0
  %692 = vmatmul.mubr.f32.gmra.mrb[0].mxu0 %v277
  %v693 = vpop.f32.mrb[0].mxu0
  %v694 = vadd.f32 0.0, %v693
  %v695 = vpop.f32.mrb[0].mxu0
  %v696 = vadd.f32 0.0, %v695
  %697 = vmatprep.mubr.f32.mxu0 0.0
  %698 = vmatmul.mubr.f32.gmra.mrb[0].mxu0 %v280
  %v699 = vpop.f32.mrb[0].mxu0
  %v700 = vadd.f32 0.0, %v699
  %v701 = vpop.f32.mrb[0].mxu0
  %v702 = vadd.f32 0.0, %v701
  %703 = vmatprep.mubr.f32.mxu0 0.0
  %704 = vmatmul.mubr.f32.gmra.mrb[0].mxu0 %v283
  %v705 = vpop.f32.mrb[0].mxu0
  %v706 = vadd.f32 0.0, %v705
  %v707 = vpop.f32.mrb[0].mxu0
  %v708 = vadd.f32 0.0, %v707
  %709 = vmatprep.mubr.f32.mxu0 0.0
  %710 = vmatmul.mubr.f32.gmra.mrb[0].mxu0 %v286
  %v711 = vpop.f32.mrb[0].mxu0
  %v712 = vadd.f32 0.0, %v711
  %v713 = vpop.f32.mrb[0].mxu0
  %v714 = vadd.f32 0.0, %v713
  %715 = vmatprep.mubr.f32.mxu0 0.0
  %716 = vmatmul.mubr.f32.gmra.mrb[0].mxu0 %v289
  %v717 = vpop.f32.mrb[0].mxu0
  %v718 = vadd.f32 0.0, %v717
  %v719 = vpop.f32.mrb[0].mxu0
  %v720 = vadd.f32 0.0, %v719
  %721 = vmatprep.mubr.f32.mxu0 0.0
  %722 = vmatmul.mubr.f32.gmra.mrb[0].mxu0 %v292
  %v723 = vpop.f32.mrb[0].mxu0
  %v724 = vadd.f32 0.0, %v723
  %v725 = vpop.f32.mrb[0].mxu0
  %v726 = vadd.f32 0.0, %v725
  %727 = vmatprep.mubr.f32.mxu0 0.0
  %728 = vmatmul.mubr.f32.gmra.mrb[0].mxu0 %v295
  %v729 = vpop.f32.mrb[0].mxu0
  %v730 = vadd.f32 0.0, %v729
  %v731 = vpop.f32.mrb[0].mxu0
  %v732 = vadd.f32 0.0, %v731
  %733 = vmatprep.mubr.f32.mxu0 0.0
  %734 = vmatmul.mubr.f32.gmra.mrb[0].mxu0 %v298
  %v735 = vpop.f32.mrb[0].mxu0
  %v736 = vadd.f32 0.0, %v735
  %v737 = vpop.f32.mrb[0].mxu0
  %v738 = vadd.f32 0.0, %v737
  %739 = vmatprep.mubr.f32.mxu0 0.0
  %740 = vmatmul.mubr.f32.gmra.mrb[0].mxu0 %v301
  %v741 = vpop.f32.mrb[0].mxu0
  %v742 = vadd.f32 0.0, %v741
  %v743 = vpop.f32.mrb[0].mxu0
  %v744 = vadd.f32 0.0, %v743
  %745 = vmatprep.mubr.f32.mxu0 0.0
  %746 = vmatmul.mubr.f32.gmra.mrb[0].mxu0 %v304
  %v747 = vpop.f32.mrb[0].mxu0
  %v748 = vadd.f32 0.0, %v747
  %v749 = vpop.f32.mrb[0].mxu0
  %v750 = vadd.f32 0.0, %v749
  %751 = vmatprep.mubr.f32.mxu0 0.0
  %752 = vmatmul.mubr.f32.gmra.mrb[0].mxu0 %v307
  %v753 = vpop.f32.mrb[0].mxu0
  %v754 = vadd.f32 0.0, %v753
  %v755 = vpop.f32.mrb[0].mxu0
  %v756 = vadd.f32 0.0, %v755
  %757 = vmatprep.mubr.f32.mxu0 0.0
  %758 = vmatmul.mubr.f32.gmra.mrb[0].mxu0 %v310
  %v759 = vpop.f32.mrb[0].mxu0
  %v760 = vadd.f32 0.0, %v759
  %v761 = vpop.f32.mrb[0].mxu0
  %v762 = vadd.f32 0.0, %v761
  %763 = vmatprep.mubr.f32.mxu0 0.0
  %764 = vmatmul.mubr.f32.gmra.mrb[0].mxu0 %v313
  %v765 = vpop.f32.mrb[0].mxu0
  %v766 = vadd.f32 0.0, %v765
  %v767 = vpop.f32.mrb[0].mxu0
  %v768 = vadd.f32 0.0, %v767
  %769 = vmatprep.mubr.f32.mxu0 0.0
  %770 = vmatmul.mubr.f32.gmra.mrb[0].mxu0 %v316
  %v771 = vpop.f32.mrb[0].mxu0
  %v772 = vadd.f32 0.0, %v771
  %v773 = vpop.f32.mrb[0].mxu0
  %v774 = vadd.f32 0.0, %v773
  %775 = vmatprep.mubr.f32.mxu0 0.0
  %776 = vmatmul.mubr.f32.gmra.mrb[0].mxu0 %v319
  %v777 = vpop.f32.mrb[0].mxu0
  %v778 = vadd.f32 0.0, %v777
  %v779 = vpop.f32.mrb[0].mxu0
  %v780 = vadd.f32 0.0, %v779
  %781 = vdwg.mxu0
  %v782 = vmul.f32 %v388, %v388
  %v783 = vmul.f32 %v394, %v394
  %v784 = vmul.f32 %v400, %v400
  %v785 = vmul.f32 %v406, %v406
  %v786 = vmul.f32 %v412, %v412
  %v787 = vmul.f32 %v418, %v418
  %v788 = vmul.f32 %v424, %v424
  %v789 = vmul.f32 %v430, %v430
  %v790 = vmul.f32 %v436, %v436
  %v791 = vmul.f32 %v442, %v442
  %v792 = vmul.f32 %v448, %v448
  %v793 = vmul.f32 %v454, %v454
  %v794 = vmul.f32 %v460, %v460
  %v795 = vmul.f32 %v466, %v466
  %v796 = vmul.f32 %v472, %v472
  %v797 = vmul.f32 %v478, %v478
  %v798 = vmul.f32 %v484, %v484
  %v799 = vmul.f32 %v490, %v490
  %v800 = vmul.f32 %v496, %v496
  %v801 = vmul.f32 %v502, %v502
  %v802 = vmul.f32 %v508, %v508
  %v803 = vmul.f32 %v514, %v514
  %v804 = vmul.f32 %v520, %v520
  %v805 = vmul.f32 %v526, %v526
  %v806 = vmul.f32 %v532, %v532
  %v807 = vmul.f32 %v538, %v538
  %v808 = vmul.f32 %v544, %v544
  %v809 = vmul.f32 %v550, %v550
  %v810 = vmul.f32 %v556, %v556
  %v811 = vmul.f32 %v562, %v562
  %v812 = vmul.f32 %v568, %v568
  %v813 = vmul.f32 %v574, %v574
  %v814 = vmul.f32 %v580, %v580
  %v815 = vmul.f32 %v586, %v586
  %v816 = vmul.f32 %v592, %v592
  %v817 = vmul.f32 %v598, %v598
  %v818 = vmul.f32 %v604, %v604
  %v819 = vmul.f32 %v610, %v610
  %v820 = vmul.f32 %v616, %v616
  %v821 = vmul.f32 %v622, %v622
  %v822 = vmul.f32 %v628, %v628
  %v823 = vmul.f32 %v634, %v634
  %v824 = vmul.f32 %v640, %v640
  %v825 = vmul.f32 %v646, %v646
  %v826 = vmul.f32 %v652, %v652
  %v827 = vmul.f32 %v658, %v658
  %v828 = vmul.f32 %v664, %v664
  %v829 = vmul.f32 %v670, %v670
  %v830 = vmul.f32 %v676, %v676
  %v831 = vmul.f32 %v682, %v682
  %v832 = vmul.f32 %v688, %v688
  %v833 = vmul.f32 %v694, %v694
  %v834 = vmul.f32 %v700, %v700
  %v835 = vmul.f32 %v706, %v706
  %v836 = vmul.f32 %v712, %v712
  %v837 = vmul.f32 %v718, %v718
  %v838 = vmul.f32 %v724, %v724
  %v839 = vmul.f32 %v730, %v730
  %v840 = vmul.f32 %v736, %v736
  %v841 = vmul.f32 %v742, %v742
  %v842 = vmul.f32 %v748, %v748
  %v843 = vmul.f32 %v754, %v754
  %v844 = vmul.f32 %v760, %v760
  %v845 = vmul.f32 %v766, %v766
  %v846 = vmul.f32 %v772, %v772
  %v847 = vmul.f32 %v778, %v778
  %v848 = vmul.f32 %v390, %v390
  %v849 = vmul.f32 %v396, %v396
  %v850 = vmul.f32 %v402, %v402
  %v851 = vmul.f32 %v408, %v408
  %v852 = vmul.f32 %v414, %v414
  %v853 = vmul.f32 %v420, %v420
  %v854 = vmul.f32 %v426, %v426
  %v855 = vmul.f32 %v432, %v432
  %v856 = vmul.f32 %v438, %v438
  %v857 = vmul.f32 %v444, %v444
  %v858 = vmul.f32 %v450, %v450
  %v859 = vmul.f32 %v456, %v456
  %v860 = vmul.f32 %v462, %v462
  %v861 = vmul.f32 %v468, %v468
  %v862 = vmul.f32 %v474, %v474
  %v863 = vmul.f32 %v480, %v480
  %v864 = vmul.f32 %v486, %v486
  %v865 = vmul.f32 %v492, %v492
  %v866 = vmul.f32 %v498, %v498
  %v867 = vmul.f32 %v504, %v504
  %v868 = vmul.f32 %v510, %v510
  %v869 = vmul.f32 %v516, %v516
  %v870 = vmul.f32 %v522, %v522
  %v871 = vmul.f32 %v528, %v528
  %v872 = vmul.f32 %v534, %v534
  %v873 = vmul.f32 %v540, %v540
  %v874 = vmul.f32 %v546, %v546
  %v875 = vmul.f32 %v552, %v552
  %v876 = vmul.f32 %v558, %v558
  %v877 = vmul.f32 %v564, %v564
  %v878 = vmul.f32 %v570, %v570
  %v879 = vmul.f32 %v576, %v576
  %v880 = vmul.f32 %v582, %v582
  %v881 = vmul.f32 %v588, %v588
  %v882 = vmul.f32 %v594, %v594
  %v883 = vmul.f32 %v600, %v600
  %v884 = vmul.f32 %v606, %v606
  %v885 = vmul.f32 %v612, %v612
  %v886 = vmul.f32 %v618, %v618
  %v887 = vmul.f32 %v624, %v624
  %v888 = vmul.f32 %v630, %v630
  %v889 = vmul.f32 %v636, %v636
  %v890 = vmul.f32 %v642, %v642
  %v891 = vmul.f32 %v648, %v648
  %v892 = vmul.f32 %v654, %v654
  %v893 = vmul.f32 %v660, %v660
  %v894 = vmul.f32 %v666, %v666
  %v895 = vmul.f32 %v672, %v672
  %v896 = vmul.f32 %v678, %v678
  %v897 = vmul.f32 %v684, %v684
  %v898 = vmul.f32 %v690, %v690
  %v899 = vmul.f32 %v696, %v696
  %v900 = vmul.f32 %v702, %v702
  %v901 = vmul.f32 %v708, %v708
  %v902 = vmul.f32 %v714, %v714
  %v903 = vmul.f32 %v720, %v720
  %v904 = vmul.f32 %v726, %v726
  %v905 = vmul.f32 %v732, %v732
  %v906 = vmul.f32 %v738, %v738
  %v907 = vmul.f32 %v744, %v744
  %v908 = vmul.f32 %v750, %v750
  %v909 = vmul.f32 %v756, %v756
  %v910 = vmul.f32 %v762, %v762
  %v911 = vmul.f32 %v768, %v768
  %v912 = vmul.f32 %v774, %v774
  %v913 = vmul.f32 %v780, %v780
  %v914 = vadd.f32 %v782, %v848
  %v915 = vadd.f32 %v783, %v849
  %v916 = vadd.f32 %v784, %v850
  %v917 = vadd.f32 %v785, %v851
  %v918 = vadd.f32 %v786, %v852
  %v919 = vadd.f32 %v787, %v853
  %v920 = vadd.f32 %v788, %v854
  %v921 = vadd.f32 %v789, %v855
  %v922 = vadd.f32 %v790, %v856
  %v923 = vadd.f32 %v791, %v857
  %v924 = vadd.f32 %v792, %v858
  %v925 = vadd.f32 %v793, %v859
  %v926 = vadd.f32 %v794, %v860
  %v927 = vadd.f32 %v795, %v861
  %v928 = vadd.f32 %v796, %v862
  %v929 = vadd.f32 %v797, %v863
  %v930 = vadd.f32 %v798, %v864
  %v931 = vadd.f32 %v799, %v865
  %v932 = vadd.f32 %v800, %v866
  %v933 = vadd.f32 %v801, %v867
  %v934 = vadd.f32 %v802, %v868
  %v935 = vadd.f32 %v803, %v869
  %v936 = vadd.f32 %v804, %v870
  %v937 = vadd.f32 %v805, %v871
  %v938 = vadd.f32 %v806, %v872
  %v939 = vadd.f32 %v807, %v873
  %v940 = vadd.f32 %v808, %v874
  %v941 = vadd.f32 %v809, %v875
  %v942 = vadd.f32 %v810, %v876
  %v943 = vadd.f32 %v811, %v877
  %v944 = vadd.f32 %v812, %v878
  %v945 = vadd.f32 %v813, %v879
  %v946 = vadd.f32 %v814, %v880
  %v947 = vadd.f32 %v815, %v881
  %v948 = vadd.f32 %v816, %v882
  %v949 = vadd.f32 %v817, %v883
  %v950 = vadd.f32 %v818, %v884
  %v951 = vadd.f32 %v819, %v885
  %v952 = vadd.f32 %v820, %v886
  %v953 = vadd.f32 %v821, %v887
  %v954 = vadd.f32 %v822, %v888
  %v955 = vadd.f32 %v823, %v889
  %v956 = vadd.f32 %v824, %v890
  %v957 = vadd.f32 %v825, %v891
  %v958 = vadd.f32 %v826, %v892
  %v959 = vadd.f32 %v827, %v893
  %v960 = vadd.f32 %v828, %v894
  %v961 = vadd.f32 %v829, %v895
  %v962 = vadd.f32 %v830, %v896
  %v963 = vadd.f32 %v831, %v897
  %v964 = vadd.f32 %v832, %v898
  %v965 = vadd.f32 %v833, %v899
  %v966 = vadd.f32 %v834, %v900
  %v967 = vadd.f32 %v835, %v901
  %v968 = vadd.f32 %v836, %v902
  %v969 = vadd.f32 %v837, %v903
  %v970 = vadd.f32 %v838, %v904
  %v971 = vadd.f32 %v839, %v905
  %v972 = vadd.f32 %v840, %v906
  %v973 = vadd.f32 %v841, %v907
  %v974 = vadd.f32 %v842, %v908
  %v975 = vadd.f32 %v843, %v909
  %v976 = vadd.f32 %v844, %v910
  %v977 = vadd.f32 %v845, %v911
  %v978 = vadd.f32 %v846, %v912
  %v979 = vadd.f32 %v847, %v913
  %v980 = vmax.f32 %v914, 1e-07
  %v981 = vmax.f32 %v915, 1e-07
  %v982 = vmax.f32 %v916, 1e-07
  %v983 = vmax.f32 %v917, 1e-07
  %v984 = vmax.f32 %v918, 1e-07
  %v985 = vmax.f32 %v919, 1e-07
  %v986 = vmax.f32 %v920, 1e-07
  %v987 = vmax.f32 %v921, 1e-07
  %v988 = vmax.f32 %v922, 1e-07
  %v989 = vmax.f32 %v923, 1e-07
  %v990 = vmax.f32 %v924, 1e-07
  %v991 = vmax.f32 %v925, 1e-07
  %v992 = vmax.f32 %v926, 1e-07
  %v993 = vmax.f32 %v927, 1e-07
  %v994 = vmax.f32 %v928, 1e-07
  %v995 = vmax.f32 %v929, 1e-07
  %v996 = vmax.f32 %v930, 1e-07
  %v997 = vmax.f32 %v931, 1e-07
  %v998 = vmax.f32 %v932, 1e-07
  %v999 = vmax.f32 %v933, 1e-07
  %v1000 = vmax.f32 %v934, 1e-07
  %v1001 = vmax.f32 %v935, 1e-07
  %v1002 = vmax.f32 %v936, 1e-07
  %v1003 = vmax.f32 %v937, 1e-07
  %v1004 = vmax.f32 %v938, 1e-07
  %v1005 = vmax.f32 %v939, 1e-07
  %v1006 = vmax.f32 %v940, 1e-07
  %v1007 = vmax.f32 %v941, 1e-07
  %v1008 = vmax.f32 %v942, 1e-07
  %v1009 = vmax.f32 %v943, 1e-07
  %v1010 = vmax.f32 %v944, 1e-07
  %v1011 = vmax.f32 %v945, 1e-07
  %v1012 = vmax.f32 %v946, 1e-07
  %v1013 = vmax.f32 %v947, 1e-07
  %v1014 = vmax.f32 %v948, 1e-07
  %v1015 = vmax.f32 %v949, 1e-07
  %v1016 = vmax.f32 %v950, 1e-07
  %v1017 = vmax.f32 %v951, 1e-07
  %v1018 = vmax.f32 %v952, 1e-07
  %v1019 = vmax.f32 %v953, 1e-07
  %v1020 = vmax.f32 %v954, 1e-07
  %v1021 = vmax.f32 %v955, 1e-07
  %v1022 = vmax.f32 %v956, 1e-07
  %v1023 = vmax.f32 %v957, 1e-07
  %v1024 = vmax.f32 %v958, 1e-07
  %v1025 = vmax.f32 %v959, 1e-07
  %v1026 = vmax.f32 %v960, 1e-07
  %v1027 = vmax.f32 %v961, 1e-07
  %v1028 = vmax.f32 %v962, 1e-07
  %v1029 = vmax.f32 %v963, 1e-07
  %v1030 = vmax.f32 %v964, 1e-07
  %v1031 = vmax.f32 %v965, 1e-07
  %v1032 = vmax.f32 %v966, 1e-07
  %v1033 = vmax.f32 %v967, 1e-07
  %v1034 = vmax.f32 %v968, 1e-07
  %v1035 = vmax.f32 %v969, 1e-07
  %v1036 = vmax.f32 %v970, 1e-07
  %v1037 = vmax.f32 %v971, 1e-07
  %v1038 = vmax.f32 %v972, 1e-07
  %v1039 = vmax.f32 %v973, 1e-07
  %v1040 = vmax.f32 %v974, 1e-07
  %v1041 = vmax.f32 %v975, 1e-07
  %v1042 = vmax.f32 %v976, 1e-07
  %v1043 = vmax.f32 %v977, 1e-07
  %v1044 = vmax.f32 %v978, 1e-07
  %v1045 = vmax.f32 %v979, 1e-07
  %v1046 = vrsqrt.pop %v980
  %v1047 = vmul.f32 %v980, %v1046
  %vm1048 = vcmp.eq.f32.partialorder %v980, inf
  %v1049 = vsel %vm1048, %v980, %v1047
  %vm1050 = vcmp.eq.f32.partialorder %v980, 0.0
  %v1051 = vand.u32 %v980, 2147483648
  %v1052 = vsel %vm1050, %v1051, %v1049
  %v1053 = vrsqrt.pop %v981
  %v1054 = vmul.f32 %v981, %v1053
  %vm1055 = vcmp.eq.f32.partialorder %v981, inf
  %v1056 = vsel %vm1055, %v981, %v1054
  %vm1057 = vcmp.eq.f32.partialorder %v981, 0.0
  %v1058 = vand.u32 %v981, 2147483648
  %v1059 = vsel %vm1057, %v1058, %v1056
  %v1060 = vrsqrt.pop %v982
  %v1061 = vmul.f32 %v982, %v1060
  %vm1062 = vcmp.eq.f32.partialorder %v982, inf
  %v1063 = vsel %vm1062, %v982, %v1061
  %vm1064 = vcmp.eq.f32.partialorder %v982, 0.0
  %v1065 = vand.u32 %v982, 2147483648
  %v1066 = vsel %vm1064, %v1065, %v1063
  %v1067 = vrsqrt.pop %v983
  %v1068 = vmul.f32 %v983, %v1067
  %vm1069 = vcmp.eq.f32.partialorder %v983, inf
  %v1070 = vsel %vm1069, %v983, %v1068
  %vm1071 = vcmp.eq.f32.partialorder %v983, 0.0
  %v1072 = vand.u32 %v983, 2147483648
  %v1073 = vsel %vm1071, %v1072, %v1070
  %v1074 = vrsqrt.pop %v984
  %v1075 = vmul.f32 %v984, %v1074
  %vm1076 = vcmp.eq.f32.partialorder %v984, inf
  %v1077 = vsel %vm1076, %v984, %v1075
  %vm1078 = vcmp.eq.f32.partialorder %v984, 0.0
  %v1079 = vand.u32 %v984, 2147483648
  %v1080 = vsel %vm1078, %v1079, %v1077
  %v1081 = vrsqrt.pop %v985
  %v1082 = vmul.f32 %v985, %v1081
  %vm1083 = vcmp.eq.f32.partialorder %v985, inf
  %v1084 = vsel %vm1083, %v985, %v1082
  %vm1085 = vcmp.eq.f32.partialorder %v985, 0.0
  %v1086 = vand.u32 %v985, 2147483648
  %v1087 = vsel %vm1085, %v1086, %v1084
  %v1088 = vrsqrt.pop %v986
  %v1089 = vmul.f32 %v986, %v1088
  %vm1090 = vcmp.eq.f32.partialorder %v986, inf
  %v1091 = vsel %vm1090, %v986, %v1089
  %vm1092 = vcmp.eq.f32.partialorder %v986, 0.0
  %v1093 = vand.u32 %v986, 2147483648
  %v1094 = vsel %vm1092, %v1093, %v1091
  %v1095 = vrsqrt.pop %v987
  %v1096 = vmul.f32 %v987, %v1095
  %vm1097 = vcmp.eq.f32.partialorder %v987, inf
  %v1098 = vsel %vm1097, %v987, %v1096
  %vm1099 = vcmp.eq.f32.partialorder %v987, 0.0
  %v1100 = vand.u32 %v987, 2147483648
  %v1101 = vsel %vm1099, %v1100, %v1098
  %v1102 = vrsqrt.pop %v988
  %v1103 = vmul.f32 %v988, %v1102
  %vm1104 = vcmp.eq.f32.partialorder %v988, inf
  %v1105 = vsel %vm1104, %v988, %v1103
  %vm1106 = vcmp.eq.f32.partialorder %v988, 0.0
  %v1107 = vand.u32 %v988, 2147483648
  %v1108 = vsel %vm1106, %v1107, %v1105
  %v1109 = vrsqrt.pop %v989
  %v1110 = vmul.f32 %v989, %v1109
  %vm1111 = vcmp.eq.f32.partialorder %v989, inf
  %v1112 = vsel %vm1111, %v989, %v1110
  %vm1113 = vcmp.eq.f32.partialorder %v989, 0.0
  %v1114 = vand.u32 %v989, 2147483648
  %v1115 = vsel %vm1113, %v1114, %v1112
  %v1116 = vrsqrt.pop %v990
  %v1117 = vmul.f32 %v990, %v1116
  %vm1118 = vcmp.eq.f32.partialorder %v990, inf
  %v1119 = vsel %vm1118, %v990, %v1117
  %vm1120 = vcmp.eq.f32.partialorder %v990, 0.0
  %v1121 = vand.u32 %v990, 2147483648
  %v1122 = vsel %vm1120, %v1121, %v1119
  %v1123 = vrsqrt.pop %v991
  %v1124 = vmul.f32 %v991, %v1123
  %vm1125 = vcmp.eq.f32.partialorder %v991, inf
  %v1126 = vsel %vm1125, %v991, %v1124
  %vm1127 = vcmp.eq.f32.partialorder %v991, 0.0
  %v1128 = vand.u32 %v991, 2147483648
  %v1129 = vsel %vm1127, %v1128, %v1126
  %v1130 = vrsqrt.pop %v992
  %v1131 = vmul.f32 %v992, %v1130
  %vm1132 = vcmp.eq.f32.partialorder %v992, inf
  %v1133 = vsel %vm1132, %v992, %v1131
  %vm1134 = vcmp.eq.f32.partialorder %v992, 0.0
  %v1135 = vand.u32 %v992, 2147483648
  %v1136 = vsel %vm1134, %v1135, %v1133
  %v1137 = vrsqrt.pop %v993
  %v1138 = vmul.f32 %v993, %v1137
  %vm1139 = vcmp.eq.f32.partialorder %v993, inf
  %v1140 = vsel %vm1139, %v993, %v1138
  %vm1141 = vcmp.eq.f32.partialorder %v993, 0.0
  %v1142 = vand.u32 %v993, 2147483648
  %v1143 = vsel %vm1141, %v1142, %v1140
  %v1144 = vrsqrt.pop %v994
  %v1145 = vmul.f32 %v994, %v1144
  %vm1146 = vcmp.eq.f32.partialorder %v994, inf
  %v1147 = vsel %vm1146, %v994, %v1145
  %vm1148 = vcmp.eq.f32.partialorder %v994, 0.0
  %v1149 = vand.u32 %v994, 2147483648
  %v1150 = vsel %vm1148, %v1149, %v1147
  %v1151 = vrsqrt.pop %v995
  %v1152 = vmul.f32 %v995, %v1151
  %vm1153 = vcmp.eq.f32.partialorder %v995, inf
  %v1154 = vsel %vm1153, %v995, %v1152
  %vm1155 = vcmp.eq.f32.partialorder %v995, 0.0
  %v1156 = vand.u32 %v995, 2147483648
  %v1157 = vsel %vm1155, %v1156, %v1154
  %v1158 = vrsqrt.pop %v996
  %v1159 = vmul.f32 %v996, %v1158
  %vm1160 = vcmp.eq.f32.partialorder %v996, inf
  %v1161 = vsel %vm1160, %v996, %v1159
  %vm1162 = vcmp.eq.f32.partialorder %v996, 0.0
  %v1163 = vand.u32 %v996, 2147483648
  %v1164 = vsel %vm1162, %v1163, %v1161
  %v1165 = vrsqrt.pop %v997
  %v1166 = vmul.f32 %v997, %v1165
  %vm1167 = vcmp.eq.f32.partialorder %v997, inf
  %v1168 = vsel %vm1167, %v997, %v1166
  %vm1169 = vcmp.eq.f32.partialorder %v997, 0.0
  %v1170 = vand.u32 %v997, 2147483648
  %v1171 = vsel %vm1169, %v1170, %v1168
  %v1172 = vrsqrt.pop %v998
  %v1173 = vmul.f32 %v998, %v1172
  %vm1174 = vcmp.eq.f32.partialorder %v998, inf
  %v1175 = vsel %vm1174, %v998, %v1173
  %vm1176 = vcmp.eq.f32.partialorder %v998, 0.0
  %v1177 = vand.u32 %v998, 2147483648
  %v1178 = vsel %vm1176, %v1177, %v1175
  %v1179 = vrsqrt.pop %v999
  %v1180 = vmul.f32 %v999, %v1179
  %vm1181 = vcmp.eq.f32.partialorder %v999, inf
  %v1182 = vsel %vm1181, %v999, %v1180
  %vm1183 = vcmp.eq.f32.partialorder %v999, 0.0
  %v1184 = vand.u32 %v999, 2147483648
  %v1185 = vsel %vm1183, %v1184, %v1182
  %v1186 = vrsqrt.pop %v1000
  %v1187 = vmul.f32 %v1000, %v1186
  %vm1188 = vcmp.eq.f32.partialorder %v1000, inf
  %v1189 = vsel %vm1188, %v1000, %v1187
  %vm1190 = vcmp.eq.f32.partialorder %v1000, 0.0
  %v1191 = vand.u32 %v1000, 2147483648
  %v1192 = vsel %vm1190, %v1191, %v1189
  %v1193 = vrsqrt.pop %v1001
  %v1194 = vmul.f32 %v1001, %v1193
  %vm1195 = vcmp.eq.f32.partialorder %v1001, inf
  %v1196 = vsel %vm1195, %v1001, %v1194
  %vm1197 = vcmp.eq.f32.partialorder %v1001, 0.0
  %v1198 = vand.u32 %v1001, 2147483648
  %v1199 = vsel %vm1197, %v1198, %v1196
  %v1200 = vrsqrt.pop %v1002
  %v1201 = vmul.f32 %v1002, %v1200
  %vm1202 = vcmp.eq.f32.partialorder %v1002, inf
  %v1203 = vsel %vm1202, %v1002, %v1201
  %vm1204 = vcmp.eq.f32.partialorder %v1002, 0.0
  %v1205 = vand.u32 %v1002, 2147483648
  %v1206 = vsel %vm1204, %v1205, %v1203
  %v1207 = vrsqrt.pop %v1003
  %v1208 = vmul.f32 %v1003, %v1207
  %vm1209 = vcmp.eq.f32.partialorder %v1003, inf
  %v1210 = vsel %vm1209, %v1003, %v1208
  %vm1211 = vcmp.eq.f32.partialorder %v1003, 0.0
  %v1212 = vand.u32 %v1003, 2147483648
  %v1213 = vsel %vm1211, %v1212, %v1210
  %v1214 = vrsqrt.pop %v1004
  %v1215 = vmul.f32 %v1004, %v1214
  %vm1216 = vcmp.eq.f32.partialorder %v1004, inf
  %v1217 = vsel %vm1216, %v1004, %v1215
  %vm1218 = vcmp.eq.f32.partialorder %v1004, 0.0
  %v1219 = vand.u32 %v1004, 2147483648
  %v1220 = vsel %vm1218, %v1219, %v1217
  %v1221 = vrsqrt.pop %v1005
  %v1222 = vmul.f32 %v1005, %v1221
  %vm1223 = vcmp.eq.f32.partialorder %v1005, inf
  %v1224 = vsel %vm1223, %v1005, %v1222
  %vm1225 = vcmp.eq.f32.partialorder %v1005, 0.0
  %v1226 = vand.u32 %v1005, 2147483648
  %v1227 = vsel %vm1225, %v1226, %v1224
  %v1228 = vrsqrt.pop %v1006
  %v1229 = vmul.f32 %v1006, %v1228
  %vm1230 = vcmp.eq.f32.partialorder %v1006, inf
  %v1231 = vsel %vm1230, %v1006, %v1229
  %vm1232 = vcmp.eq.f32.partialorder %v1006, 0.0
  %v1233 = vand.u32 %v1006, 2147483648
  %v1234 = vsel %vm1232, %v1233, %v1231
  %v1235 = vrsqrt.pop %v1007
  %v1236 = vmul.f32 %v1007, %v1235
  %vm1237 = vcmp.eq.f32.partialorder %v1007, inf
  %v1238 = vsel %vm1237, %v1007, %v1236
  %vm1239 = vcmp.eq.f32.partialorder %v1007, 0.0
  %v1240 = vand.u32 %v1007, 2147483648
  %v1241 = vsel %vm1239, %v1240, %v1238
  %v1242 = vrsqrt.pop %v1008
  %v1243 = vmul.f32 %v1008, %v1242
  %vm1244 = vcmp.eq.f32.partialorder %v1008, inf
  %v1245 = vsel %vm1244, %v1008, %v1243
  %vm1246 = vcmp.eq.f32.partialorder %v1008, 0.0
  %v1247 = vand.u32 %v1008, 2147483648
  %v1248 = vsel %vm1246, %v1247, %v1245
  %v1249 = vrsqrt.pop %v1009
  %v1250 = vmul.f32 %v1009, %v1249
  %vm1251 = vcmp.eq.f32.partialorder %v1009, inf
  %v1252 = vsel %vm1251, %v1009, %v1250
  %vm1253 = vcmp.eq.f32.partialorder %v1009, 0.0
  %v1254 = vand.u32 %v1009, 2147483648
  %v1255 = vsel %vm1253, %v1254, %v1252
  %v1256 = vrsqrt.pop %v1010
  %v1257 = vmul.f32 %v1010, %v1256
  %vm1258 = vcmp.eq.f32.partialorder %v1010, inf
  %v1259 = vsel %vm1258, %v1010, %v1257
  %vm1260 = vcmp.eq.f32.partialorder %v1010, 0.0
  %v1261 = vand.u32 %v1010, 2147483648
  %v1262 = vsel %vm1260, %v1261, %v1259
  %v1263 = vrsqrt.pop %v1011
  %v1264 = vmul.f32 %v1011, %v1263
  %vm1265 = vcmp.eq.f32.partialorder %v1011, inf
  %v1266 = vsel %vm1265, %v1011, %v1264
  %vm1267 = vcmp.eq.f32.partialorder %v1011, 0.0
  %v1268 = vand.u32 %v1011, 2147483648
  %v1269 = vsel %vm1267, %v1268, %v1266
  %v1270 = vrsqrt.pop %v1012
  %v1271 = vmul.f32 %v1012, %v1270
  %vm1272 = vcmp.eq.f32.partialorder %v1012, inf
  %v1273 = vsel %vm1272, %v1012, %v1271
  %vm1274 = vcmp.eq.f32.partialorder %v1012, 0.0
  %v1275 = vand.u32 %v1012, 2147483648
  %v1276 = vsel %vm1274, %v1275, %v1273
  %v1277 = vrsqrt.pop %v1013
  %v1278 = vmul.f32 %v1013, %v1277
  %vm1279 = vcmp.eq.f32.partialorder %v1013, inf
  %v1280 = vsel %vm1279, %v1013, %v1278
  %vm1281 = vcmp.eq.f32.partialorder %v1013, 0.0
  %v1282 = vand.u32 %v1013, 2147483648
  %v1283 = vsel %vm1281, %v1282, %v1280
  %v1284 = vrsqrt.pop %v1014
  %v1285 = vmul.f32 %v1014, %v1284
  %vm1286 = vcmp.eq.f32.partialorder %v1014, inf
  %v1287 = vsel %vm1286, %v1014, %v1285
  %vm1288 = vcmp.eq.f32.partialorder %v1014, 0.0
  %v1289 = vand.u32 %v1014, 2147483648
  %v1290 = vsel %vm1288, %v1289, %v1287
  %v1291 = vrsqrt.pop %v1015
  %v1292 = vmul.f32 %v1015, %v1291
  %vm1293 = vcmp.eq.f32.partialorder %v1015, inf
  %v1294 = vsel %vm1293, %v1015, %v1292
  %vm1295 = vcmp.eq.f32.partialorder %v1015, 0.0
  %v1296 = vand.u32 %v1015, 2147483648
  %v1297 = vsel %vm1295, %v1296, %v1294
  %v1298 = vrsqrt.pop %v1016
  %v1299 = vmul.f32 %v1016, %v1298
  %vm1300 = vcmp.eq.f32.partialorder %v1016, inf
  %v1301 = vsel %vm1300, %v1016, %v1299
  %vm1302 = vcmp.eq.f32.partialorder %v1016, 0.0
  %v1303 = vand.u32 %v1016, 2147483648
  %v1304 = vsel %vm1302, %v1303, %v1301
  %v1305 = vrsqrt.pop %v1017
  %v1306 = vmul.f32 %v1017, %v1305
  %vm1307 = vcmp.eq.f32.partialorder %v1017, inf
  %v1308 = vsel %vm1307, %v1017, %v1306
  %vm1309 = vcmp.eq.f32.partialorder %v1017, 0.0
  %v1310 = vand.u32 %v1017, 2147483648
  %v1311 = vsel %vm1309, %v1310, %v1308
  %v1312 = vrsqrt.pop %v1018
  %v1313 = vmul.f32 %v1018, %v1312
  %vm1314 = vcmp.eq.f32.partialorder %v1018, inf
  %v1315 = vsel %vm1314, %v1018, %v1313
  %vm1316 = vcmp.eq.f32.partialorder %v1018, 0.0
  %v1317 = vand.u32 %v1018, 2147483648
  %v1318 = vsel %vm1316, %v1317, %v1315
  %v1319 = vrsqrt.pop %v1019
  %v1320 = vmul.f32 %v1019, %v1319
  %vm1321 = vcmp.eq.f32.partialorder %v1019, inf
  %v1322 = vsel %vm1321, %v1019, %v1320
  %vm1323 = vcmp.eq.f32.partialorder %v1019, 0.0
  %v1324 = vand.u32 %v1019, 2147483648
  %v1325 = vsel %vm1323, %v1324, %v1322
  %v1326 = vrsqrt.pop %v1020
  %v1327 = vmul.f32 %v1020, %v1326
  %vm1328 = vcmp.eq.f32.partialorder %v1020, inf
  %v1329 = vsel %vm1328, %v1020, %v1327
  %vm1330 = vcmp.eq.f32.partialorder %v1020, 0.0
  %v1331 = vand.u32 %v1020, 2147483648
  %v1332 = vsel %vm1330, %v1331, %v1329
  %v1333 = vrsqrt.pop %v1021
  %v1334 = vmul.f32 %v1021, %v1333
  %vm1335 = vcmp.eq.f32.partialorder %v1021, inf
  %v1336 = vsel %vm1335, %v1021, %v1334
  %vm1337 = vcmp.eq.f32.partialorder %v1021, 0.0
  %v1338 = vand.u32 %v1021, 2147483648
  %v1339 = vsel %vm1337, %v1338, %v1336
  %v1340 = vrsqrt.pop %v1022
  %v1341 = vmul.f32 %v1022, %v1340
  %vm1342 = vcmp.eq.f32.partialorder %v1022, inf
  %v1343 = vsel %vm1342, %v1022, %v1341
  %vm1344 = vcmp.eq.f32.partialorder %v1022, 0.0
  %v1345 = vand.u32 %v1022, 2147483648
  %v1346 = vsel %vm1344, %v1345, %v1343
  %v1347 = vrsqrt.pop %v1023
  %v1348 = vmul.f32 %v1023, %v1347
  %vm1349 = vcmp.eq.f32.partialorder %v1023, inf
  %v1350 = vsel %vm1349, %v1023, %v1348
  %vm1351 = vcmp.eq.f32.partialorder %v1023, 0.0
  %v1352 = vand.u32 %v1023, 2147483648
  %v1353 = vsel %vm1351, %v1352, %v1350
  %v1354 = vrsqrt.pop %v1024
  %v1355 = vmul.f32 %v1024, %v1354
  %vm1356 = vcmp.eq.f32.partialorder %v1024, inf
  %v1357 = vsel %vm1356, %v1024, %v1355
  %vm1358 = vcmp.eq.f32.partialorder %v1024, 0.0
  %v1359 = vand.u32 %v1024, 2147483648
  %v1360 = vsel %vm1358, %v1359, %v1357
  %v1361 = vrsqrt.pop %v1025
  %v1362 = vmul.f32 %v1025, %v1361
  %vm1363 = vcmp.eq.f32.partialorder %v1025, inf
  %v1364 = vsel %vm1363, %v1025, %v1362
  %vm1365 = vcmp.eq.f32.partialorder %v1025, 0.0
  %v1366 = vand.u32 %v1025, 2147483648
  %v1367 = vsel %vm1365, %v1366, %v1364
  %v1368 = vrsqrt.pop %v1026
  %v1369 = vmul.f32 %v1026, %v1368
  %vm1370 = vcmp.eq.f32.partialorder %v1026, inf
  %v1371 = vsel %vm1370, %v1026, %v1369
  %vm1372 = vcmp.eq.f32.partialorder %v1026, 0.0
  %v1373 = vand.u32 %v1026, 2147483648
  %v1374 = vsel %vm1372, %v1373, %v1371
  %v1375 = vrsqrt.pop %v1027
  %v1376 = vmul.f32 %v1027, %v1375
  %vm1377 = vcmp.eq.f32.partialorder %v1027, inf
  %v1378 = vsel %vm1377, %v1027, %v1376
  %vm1379 = vcmp.eq.f32.partialorder %v1027, 0.0
  %v1380 = vand.u32 %v1027, 2147483648
  %v1381 = vsel %vm1379, %v1380, %v1378
  %v1382 = vrsqrt.pop %v1028
  %v1383 = vmul.f32 %v1028, %v1382
  %vm1384 = vcmp.eq.f32.partialorder %v1028, inf
  %v1385 = vsel %vm1384, %v1028, %v1383
  %vm1386 = vcmp.eq.f32.partialorder %v1028, 0.0
  %v1387 = vand.u32 %v1028, 2147483648
  %v1388 = vsel %vm1386, %v1387, %v1385
  %v1389 = vrsqrt.pop %v1029
  %v1390 = vmul.f32 %v1029, %v1389
  %vm1391 = vcmp.eq.f32.partialorder %v1029, inf
  %v1392 = vsel %vm1391, %v1029, %v1390
  %vm1393 = vcmp.eq.f32.partialorder %v1029, 0.0
  %v1394 = vand.u32 %v1029, 2147483648
  %v1395 = vsel %vm1393, %v1394, %v1392
  %v1396 = vrsqrt.pop %v1030
  %v1397 = vmul.f32 %v1030, %v1396
  %vm1398 = vcmp.eq.f32.partialorder %v1030, inf
  %v1399 = vsel %vm1398, %v1030, %v1397
  %vm1400 = vcmp.eq.f32.partialorder %v1030, 0.0
  %v1401 = vand.u32 %v1030, 2147483648
  %v1402 = vsel %vm1400, %v1401, %v1399
  %v1403 = vrsqrt.pop %v1031
  %v1404 = vmul.f32 %v1031, %v1403
  %vm1405 = vcmp.eq.f32.partialorder %v1031, inf
  %v1406 = vsel %vm1405, %v1031, %v1404
  %vm1407 = vcmp.eq.f32.partialorder %v1031, 0.0
  %v1408 = vand.u32 %v1031, 2147483648
  %v1409 = vsel %vm1407, %v1408, %v1406
  %v1410 = vrsqrt.pop %v1032
  %v1411 = vmul.f32 %v1032, %v1410
  %vm1412 = vcmp.eq.f32.partialorder %v1032, inf
  %v1413 = vsel %vm1412, %v1032, %v1411
  %vm1414 = vcmp.eq.f32.partialorder %v1032, 0.0
  %v1415 = vand.u32 %v1032, 2147483648
  %v1416 = vsel %vm1414, %v1415, %v1413
  %v1417 = vrsqrt.pop %v1033
  %v1418 = vmul.f32 %v1033, %v1417
  %vm1419 = vcmp.eq.f32.partialorder %v1033, inf
  %v1420 = vsel %vm1419, %v1033, %v1418
  %vm1421 = vcmp.eq.f32.partialorder %v1033, 0.0
  %v1422 = vand.u32 %v1033, 2147483648
  %v1423 = vsel %vm1421, %v1422, %v1420
  %v1424 = vrsqrt.pop %v1034
  %v1425 = vmul.f32 %v1034, %v1424
  %vm1426 = vcmp.eq.f32.partialorder %v1034, inf
  %v1427 = vsel %vm1426, %v1034, %v1425
  %vm1428 = vcmp.eq.f32.partialorder %v1034, 0.0
  %v1429 = vand.u32 %v1034, 2147483648
  %v1430 = vsel %vm1428, %v1429, %v1427
  %v1431 = vrsqrt.pop %v1035
  %v1432 = vmul.f32 %v1035, %v1431
  %vm1433 = vcmp.eq.f32.partialorder %v1035, inf
  %v1434 = vsel %vm1433, %v1035, %v1432
  %vm1435 = vcmp.eq.f32.partialorder %v1035, 0.0
  %v1436 = vand.u32 %v1035, 2147483648
  %v1437 = vsel %vm1435, %v1436, %v1434
  %v1438 = vrsqrt.pop %v1036
  %v1439 = vmul.f32 %v1036, %v1438
  %vm1440 = vcmp.eq.f32.partialorder %v1036, inf
  %v1441 = vsel %vm1440, %v1036, %v1439
  %vm1442 = vcmp.eq.f32.partialorder %v1036, 0.0
  %v1443 = vand.u32 %v1036, 2147483648
  %v1444 = vsel %vm1442, %v1443, %v1441
  %v1445 = vrsqrt.pop %v1037
  %v1446 = vmul.f32 %v1037, %v1445
  %vm1447 = vcmp.eq.f32.partialorder %v1037, inf
  %v1448 = vsel %vm1447, %v1037, %v1446
  %vm1449 = vcmp.eq.f32.partialorder %v1037, 0.0
  %v1450 = vand.u32 %v1037, 2147483648
  %v1451 = vsel %vm1449, %v1450, %v1448
  %v1452 = vrsqrt.pop %v1038
  %v1453 = vmul.f32 %v1038, %v1452
  %vm1454 = vcmp.eq.f32.partialorder %v1038, inf
  %v1455 = vsel %vm1454, %v1038, %v1453
  %vm1456 = vcmp.eq.f32.partialorder %v1038, 0.0
  %v1457 = vand.u32 %v1038, 2147483648
  %v1458 = vsel %vm1456, %v1457, %v1455
  %v1459 = vrsqrt.pop %v1039
  %v1460 = vmul.f32 %v1039, %v1459
  %vm1461 = vcmp.eq.f32.partialorder %v1039, inf
  %v1462 = vsel %vm1461, %v1039, %v1460
  %vm1463 = vcmp.eq.f32.partialorder %v1039, 0.0
  %v1464 = vand.u32 %v1039, 2147483648
  %v1465 = vsel %vm1463, %v1464, %v1462
  %v1466 = vrsqrt.pop %v1040
  %v1467 = vmul.f32 %v1040, %v1466
  %vm1468 = vcmp.eq.f32.partialorder %v1040, inf
  %v1469 = vsel %vm1468, %v1040, %v1467
  %vm1470 = vcmp.eq.f32.partialorder %v1040, 0.0
  %v1471 = vand.u32 %v1040, 2147483648
  %v1472 = vsel %vm1470, %v1471, %v1469
  %v1473 = vrsqrt.pop %v1041
  %v1474 = vmul.f32 %v1041, %v1473
  %vm1475 = vcmp.eq.f32.partialorder %v1041, inf
  %v1476 = vsel %vm1475, %v1041, %v1474
  %vm1477 = vcmp.eq.f32.partialorder %v1041, 0.0
  %v1478 = vand.u32 %v1041, 2147483648
  %v1479 = vsel %vm1477, %v1478, %v1476
  %v1480 = vrsqrt.pop %v1042
  %v1481 = vmul.f32 %v1042, %v1480
  %vm1482 = vcmp.eq.f32.partialorder %v1042, inf
  %v1483 = vsel %vm1482, %v1042, %v1481
  %vm1484 = vcmp.eq.f32.partialorder %v1042, 0.0
  %v1485 = vand.u32 %v1042, 2147483648
  %v1486 = vsel %vm1484, %v1485, %v1483
  %v1487 = vrsqrt.pop %v1043
  %v1488 = vmul.f32 %v1043, %v1487
  %vm1489 = vcmp.eq.f32.partialorder %v1043, inf
  %v1490 = vsel %vm1489, %v1043, %v1488
  %vm1491 = vcmp.eq.f32.partialorder %v1043, 0.0
  %v1492 = vand.u32 %v1043, 2147483648
  %v1493 = vsel %vm1491, %v1492, %v1490
  %v1494 = vrsqrt.pop %v1044
  %v1495 = vmul.f32 %v1044, %v1494
  %vm1496 = vcmp.eq.f32.partialorder %v1044, inf
  %v1497 = vsel %vm1496, %v1044, %v1495
  %vm1498 = vcmp.eq.f32.partialorder %v1044, 0.0
  %v1499 = vand.u32 %v1044, 2147483648
  %v1500 = vsel %vm1498, %v1499, %v1497
  %v1501 = vrsqrt.pop %v1045
  %v1502 = vmul.f32 %v1045, %v1501
  %vm1503 = vcmp.eq.f32.partialorder %v1045, inf
  %v1504 = vsel %vm1503, %v1045, %v1502
  %vm1505 = vcmp.eq.f32.partialorder %v1045, 0.0
  %v1506 = vand.u32 %v1045, 2147483648
  %v1507 = vsel %vm1505, %v1506, %v1504
  %v1508 = vadd.f32 %v1052, 1.1920929e-07
  %v1509 = vadd.f32 %v1059, 1.1920929e-07
  %v1510 = vadd.f32 %v1066, 1.1920929e-07
  %v1511 = vadd.f32 %v1073, 1.1920929e-07
  %v1512 = vadd.f32 %v1080, 1.1920929e-07
  %v1513 = vadd.f32 %v1087, 1.1920929e-07
  %v1514 = vadd.f32 %v1094, 1.1920929e-07
  %v1515 = vadd.f32 %v1101, 1.1920929e-07
  %v1516 = vadd.f32 %v1108, 1.1920929e-07
  %v1517 = vadd.f32 %v1115, 1.1920929e-07
  %v1518 = vadd.f32 %v1122, 1.1920929e-07
  %v1519 = vadd.f32 %v1129, 1.1920929e-07
  %v1520 = vadd.f32 %v1136, 1.1920929e-07
  %v1521 = vadd.f32 %v1143, 1.1920929e-07
  %v1522 = vadd.f32 %v1150, 1.1920929e-07
  %v1523 = vadd.f32 %v1157, 1.1920929e-07
  %v1524 = vadd.f32 %v1164, 1.1920929e-07
  %v1525 = vadd.f32 %v1171, 1.1920929e-07
  %v1526 = vadd.f32 %v1178, 1.1920929e-07
  %v1527 = vadd.f32 %v1185, 1.1920929e-07
  %v1528 = vadd.f32 %v1192, 1.1920929e-07
  %v1529 = vadd.f32 %v1199, 1.1920929e-07
  %v1530 = vadd.f32 %v1206, 1.1920929e-07
  %v1531 = vadd.f32 %v1213, 1.1920929e-07
  %v1532 = vadd.f32 %v1220, 1.1920929e-07
  %v1533 = vadd.f32 %v1227, 1.1920929e-07
  %v1534 = vadd.f32 %v1234, 1.1920929e-07
  %v1535 = vadd.f32 %v1241, 1.1920929e-07
  %v1536 = vadd.f32 %v1248, 1.1920929e-07
  %v1537 = vadd.f32 %v1255, 1.1920929e-07
  %v1538 = vadd.f32 %v1262, 1.1920929e-07
  %v1539 = vadd.f32 %v1269, 1.1920929e-07
  %v1540 = vadd.f32 %v1276, 1.1920929e-07
  %v1541 = vadd.f32 %v1283, 1.1920929e-07
  %v1542 = vadd.f32 %v1290, 1.1920929e-07
  %v1543 = vadd.f32 %v1297, 1.1920929e-07
  %v1544 = vadd.f32 %v1304, 1.1920929e-07
  %v1545 = vadd.f32 %v1311, 1.1920929e-07
  %v1546 = vadd.f32 %v1318, 1.1920929e-07
  %v1547 = vadd.f32 %v1325, 1.1920929e-07
  %v1548 = vadd.f32 %v1332, 1.1920929e-07
  %v1549 = vadd.f32 %v1339, 1.1920929e-07
  %v1550 = vadd.f32 %v1346, 1.1920929e-07
  %v1551 = vadd.f32 %v1353, 1.1920929e-07
  %v1552 = vadd.f32 %v1360, 1.1920929e-07
  %v1553 = vadd.f32 %v1367, 1.1920929e-07
  %v1554 = vadd.f32 %v1374, 1.1920929e-07
  %v1555 = vadd.f32 %v1381, 1.1920929e-07
  %v1556 = vadd.f32 %v1388, 1.1920929e-07
  %v1557 = vadd.f32 %v1395, 1.1920929e-07
  %v1558 = vadd.f32 %v1402, 1.1920929e-07
  %v1559 = vadd.f32 %v1409, 1.1920929e-07
  %v1560 = vadd.f32 %v1416, 1.1920929e-07
  %v1561 = vadd.f32 %v1423, 1.1920929e-07
  %v1562 = vadd.f32 %v1430, 1.1920929e-07
  %v1563 = vadd.f32 %v1437, 1.1920929e-07
  %v1564 = vadd.f32 %v1444, 1.1920929e-07
  %v1565 = vadd.f32 %v1451, 1.1920929e-07
  %v1566 = vadd.f32 %v1458, 1.1920929e-07
  %v1567 = vadd.f32 %v1465, 1.1920929e-07
  %v1568 = vadd.f32 %v1472, 1.1920929e-07
  %v1569 = vadd.f32 %v1479, 1.1920929e-07
  %v1570 = vadd.f32 %v1486, 1.1920929e-07
  %v1571 = vadd.f32 %v1493, 1.1920929e-07
  %v1572 = vadd.f32 %v1500, 1.1920929e-07
  %v1573 = vadd.f32 %v1507, 1.1920929e-07
  %v1574 = vlog2.pop %v1508
  %v1575 = vmul.f32 %v1574, 0.6931472
  %v1576 = vlog2.pop %v1509
  %v1577 = vmul.f32 %v1576, 0.6931472
  %v1578 = vlog2.pop %v1510
  %v1579 = vmul.f32 %v1578, 0.6931472
  %v1580 = vlog2.pop %v1511
  %v1581 = vmul.f32 %v1580, 0.6931472
  %v1582 = vlog2.pop %v1512
  %v1583 = vmul.f32 %v1582, 0.6931472
  %v1584 = vlog2.pop %v1513
  %v1585 = vmul.f32 %v1584, 0.6931472
  %v1586 = vlog2.pop %v1514
  %v1587 = vmul.f32 %v1586, 0.6931472
  %v1588 = vlog2.pop %v1515
  %v1589 = vmul.f32 %v1588, 0.6931472
  %v1590 = vlog2.pop %v1516
  %v1591 = vmul.f32 %v1590, 0.6931472
  %v1592 = vlog2.pop %v1517
  %v1593 = vmul.f32 %v1592, 0.6931472
  %v1594 = vlog2.pop %v1518
  %v1595 = vmul.f32 %v1594, 0.6931472
  %v1596 = vlog2.pop %v1519
  %v1597 = vmul.f32 %v1596, 0.6931472
  %v1598 = vlog2.pop %v1520
  %v1599 = vmul.f32 %v1598, 0.6931472
  %v1600 = vlog2.pop %v1521
  %v1601 = vmul.f32 %v1600, 0.6931472
  %v1602 = vlog2.pop %v1522
  %v1603 = vmul.f32 %v1602, 0.6931472
  %v1604 = vlog2.pop %v1523
  %v1605 = vmul.f32 %v1604, 0.6931472
  %v1606 = vlog2.pop %v1524
  %v1607 = vmul.f32 %v1606, 0.6931472
  %v1608 = vlog2.pop %v1525
  %v1609 = vmul.f32 %v1608, 0.6931472
  %v1610 = vlog2.pop %v1526
  %v1611 = vmul.f32 %v1610, 0.6931472
  %v1612 = vlog2.pop %v1527
  %v1613 = vmul.f32 %v1612, 0.6931472
  %v1614 = vlog2.pop %v1528
  %v1615 = vmul.f32 %v1614, 0.6931472
  %v1616 = vlog2.pop %v1529
  %v1617 = vmul.f32 %v1616, 0.6931472
  %v1618 = vlog2.pop %v1530
  %v1619 = vmul.f32 %v1618, 0.6931472
  %v1620 = vlog2.pop %v1531
  %v1621 = vmul.f32 %v1620, 0.6931472
  %v1622 = vlog2.pop %v1532
  %v1623 = vmul.f32 %v1622, 0.6931472
  %v1624 = vlog2.pop %v1533
  %v1625 = vmul.f32 %v1624, 0.6931472
  %v1626 = vlog2.pop %v1534
  %v1627 = vmul.f32 %v1626, 0.6931472
  %v1628 = vlog2.pop %v1535
  %v1629 = vmul.f32 %v1628, 0.6931472
  %v1630 = vlog2.pop %v1536
  %v1631 = vmul.f32 %v1630, 0.6931472
  %v1632 = vlog2.pop %v1537
  %v1633 = vmul.f32 %v1632, 0.6931472
  %v1634 = vlog2.pop %v1538
  %v1635 = vmul.f32 %v1634, 0.6931472
  %v1636 = vlog2.pop %v1539
  %v1637 = vmul.f32 %v1636, 0.6931472
  %v1638 = vlog2.pop %v1540
  %v1639 = vmul.f32 %v1638, 0.6931472
  %v1640 = vlog2.pop %v1541
  %v1641 = vmul.f32 %v1640, 0.6931472
  %v1642 = vlog2.pop %v1542
  %v1643 = vmul.f32 %v1642, 0.6931472
  %v1644 = vlog2.pop %v1543
  %v1645 = vmul.f32 %v1644, 0.6931472
  %v1646 = vlog2.pop %v1544
  %v1647 = vmul.f32 %v1646, 0.6931472
  %v1648 = vlog2.pop %v1545
  %v1649 = vmul.f32 %v1648, 0.6931472
  %v1650 = vlog2.pop %v1546
  %v1651 = vmul.f32 %v1650, 0.6931472
  %v1652 = vlog2.pop %v1547
  %v1653 = vmul.f32 %v1652, 0.6931472
  %v1654 = vlog2.pop %v1548
  %v1655 = vmul.f32 %v1654, 0.6931472
  %v1656 = vlog2.pop %v1549
  %v1657 = vmul.f32 %v1656, 0.6931472
  %v1658 = vlog2.pop %v1550
  %v1659 = vmul.f32 %v1658, 0.6931472
  %v1660 = vlog2.pop %v1551
  %v1661 = vmul.f32 %v1660, 0.6931472
  %v1662 = vlog2.pop %v1552
  %v1663 = vmul.f32 %v1662, 0.6931472
  %v1664 = vlog2.pop %v1553
  %v1665 = vmul.f32 %v1664, 0.6931472
  %v1666 = vlog2.pop %v1554
  %v1667 = vmul.f32 %v1666, 0.6931472
  %v1668 = vlog2.pop %v1555
  %v1669 = vmul.f32 %v1668, 0.6931472
  %v1670 = vlog2.pop %v1556
  %v1671 = vmul.f32 %v1670, 0.6931472
  %v1672 = vlog2.pop %v1557
  %v1673 = vmul.f32 %v1672, 0.6931472
  %v1674 = vlog2.pop %v1558
  %v1675 = vmul.f32 %v1674, 0.6931472
  %v1676 = vlog2.pop %v1559
  %v1677 = vmul.f32 %v1676, 0.6931472
  %v1678 = vlog2.pop %v1560
  %v1679 = vmul.f32 %v1678, 0.6931472
  %v1680 = vlog2.pop %v1561
  %v1681 = vmul.f32 %v1680, 0.6931472
  %v1682 = vlog2.pop %v1562
  %v1683 = vmul.f32 %v1682, 0.6931472
  %v1684 = vlog2.pop %v1563
  %v1685 = vmul.f32 %v1684, 0.6931472
  %v1686 = vlog2.pop %v1564
  %v1687 = vmul.f32 %v1686, 0.6931472
  %v1688 = vlog2.pop %v1565
  %v1689 = vmul.f32 %v1688, 0.6931472
  %v1690 = vlog2.pop %v1566
  %v1691 = vmul.f32 %v1690, 0.6931472
  %v1692 = vlog2.pop %v1567
  %v1693 = vmul.f32 %v1692, 0.6931472
  %v1694 = vlog2.pop %v1568
  %v1695 = vmul.f32 %v1694, 0.6931472
  %v1696 = vlog2.pop %v1569
  %v1697 = vmul.f32 %v1696, 0.6931472
  %v1698 = vlog2.pop %v1570
  %v1699 = vmul.f32 %v1698, 0.6931472
  %v1700 = vlog2.pop %v1571
  %v1701 = vmul.f32 %v1700, 0.6931472
  %v1702 = vlog2.pop %v1572
  %v1703 = vmul.f32 %v1702, 0.6931472
  %v1704 = vlog2.pop %v1573
  %v1705 = vmul.f32 %v1704, 0.6931472
  %v1706 = vsub.f32 %v1283, %v1052
  %v1707 = vsub.f32 %v1290, %v1059
  %v1708 = vsub.f32 %v1297, %v1066
  %v1709 = vsub.f32 %v1304, %v1073
  %v1710 = vsub.f32 %v1311, %v1080
  %v1711 = vsub.f32 %v1318, %v1087
  %v1712 = vsub.f32 %v1325, %v1094
  %v1713 = vsub.f32 %v1332, %v1101
  %v1714 = vsub.f32 %v1339, %v1108
  %v1715 = vsub.f32 %v1346, %v1115
  %v1716 = vsub.f32 %v1353, %v1122
  %v1717 = vsub.f32 %v1360, %v1129
  %v1718 = vsub.f32 %v1367, %v1136
  %v1719 = vsub.f32 %v1374, %v1143
  %v1720 = vsub.f32 %v1381, %v1150
  %v1721 = vsub.f32 %v1388, %v1157
  %v1722 = vsub.f32 %v1395, %v1164
  %v1723 = vsub.f32 %v1402, %v1171
  %v1724 = vsub.f32 %v1409, %v1178
  %v1725 = vsub.f32 %v1416, %v1185
  %v1726 = vsub.f32 %v1423, %v1192
  %v1727 = vsub.f32 %v1430, %v1199
  %v1728 = vsub.f32 %v1437, %v1206
  %v1729 = vsub.f32 %v1444, %v1213
  %v1730 = vsub.f32 %v1451, %v1220
  %v1731 = vsub.f32 %v1458, %v1227
  %v1732 = vsub.f32 %v1465, %v1234
  %v1733 = vsub.f32 %v1472, %v1241
  %v1734 = vsub.f32 %v1479, %v1248
  %v1735 = vsub.f32 %v1486, %v1255
  %v1736 = vsub.f32 %v1493, %v1262
  %v1737 = vsub.f32 %v1500, %v1269
  %v1738 = vsub.f32 %v1507, %v1276
  %v1739 = vsub.f32 %v1641, %v1575
  %v1740 = vsub.f32 %v1643, %v1577
  %v1741 = vsub.f32 %v1645, %v1579
  %v1742 = vsub.f32 %v1647, %v1581
  %v1743 = vsub.f32 %v1649, %v1583
  %v1744 = vsub.f32 %v1651, %v1585
  %v1745 = vsub.f32 %v1653, %v1587
  %v1746 = vsub.f32 %v1655, %v1589
  %v1747 = vsub.f32 %v1657, %v1591
  %v1748 = vsub.f32 %v1659, %v1593
  %v1749 = vsub.f32 %v1661, %v1595
  %v1750 = vsub.f32 %v1663, %v1597
  %v1751 = vsub.f32 %v1665, %v1599
  %v1752 = vsub.f32 %v1667, %v1601
  %v1753 = vsub.f32 %v1669, %v1603
  %v1754 = vsub.f32 %v1671, %v1605
  %v1755 = vsub.f32 %v1673, %v1607
  %v1756 = vsub.f32 %v1675, %v1609
  %v1757 = vsub.f32 %v1677, %v1611
  %v1758 = vsub.f32 %v1679, %v1613
  %v1759 = vsub.f32 %v1681, %v1615
  %v1760 = vsub.f32 %v1683, %v1617
  %v1761 = vsub.f32 %v1685, %v1619
  %v1762 = vsub.f32 %v1687, %v1621
  %v1763 = vsub.f32 %v1689, %v1623
  %v1764 = vsub.f32 %v1691, %v1625
  %v1765 = vsub.f32 %v1693, %v1627
  %v1766 = vsub.f32 %v1695, %v1629
  %v1767 = vsub.f32 %v1697, %v1631
  %v1768 = vsub.f32 %v1699, %v1633
  %v1769 = vsub.f32 %v1701, %v1635
  %v1770 = vsub.f32 %v1703, %v1637
  %v1771 = vsub.f32 %v1705, %v1639
  %v1772 = vand.u32 2147483647, %v1739
  %v1773 = vand.u32 2147483647, %v1740
  %v1774 = vand.u32 2147483647, %v1741
  %v1775 = vand.u32 2147483647, %v1742
  %v1776 = vand.u32 2147483647, %v1743
  %v1777 = vand.u32 2147483647, %v1744
  %v1778 = vand.u32 2147483647, %v1745
  %v1779 = vand.u32 2147483647, %v1746
  %v1780 = vand.u32 2147483647, %v1747
  %v1781 = vand.u32 2147483647, %v1748
  %v1782 = vand.u32 2147483647, %v1749
  %v1783 = vand.u32 2147483647, %v1750
  %v1784 = vand.u32 2147483647, %v1751
  %v1785 = vand.u32 2147483647, %v1752
  %v1786 = vand.u32 2147483647, %v1753
  %v1787 = vand.u32 2147483647, %v1754
  %v1788 = vand.u32 2147483647, %v1755
  %v1789 = vand.u32 2147483647, %v1756
  %v1790 = vand.u32 2147483647, %v1757
  %v1791 = vand.u32 2147483647, %v1758
  %v1792 = vand.u32 2147483647, %v1759
  %v1793 = vand.u32 2147483647, %v1760
  %v1794 = vand.u32 2147483647, %v1761
  %v1795 = vand.u32 2147483647, %v1762
  %v1796 = vand.u32 2147483647, %v1763
  %v1797 = vand.u32 2147483647, %v1764
  %v1798 = vand.u32 2147483647, %v1765
  %v1799 = vand.u32 2147483647, %v1766
  %v1800 = vand.u32 2147483647, %v1767
  %v1801 = vand.u32 2147483647, %v1768
  %v1802 = vand.u32 2147483647, %v1769
  %v1803 = vand.u32 2147483647, %v1770
  %v1804 = vand.u32 2147483647, %v1771
  %v1805 = vld [vmem:[%s2] sm:$0xff]
  %v1806 = vmul.f32 %v1706, %v1706
  %v1807 = vmul.f32 %v1707, %v1707
  %v1808 = vmul.f32 %v1708, %v1708
  %v1809 = vmul.f32 %v1709, %v1709
  %v1810 = vmul.f32 %v1710, %v1710
  %v1811 = vmul.f32 %v1711, %v1711
  %v1812 = vmul.f32 %v1712, %v1712
  %v1813 = vmul.f32 %v1713, %v1713
  %v1814 = vmul.f32 %v1714, %v1714
  %v1815 = vmul.f32 %v1715, %v1715
  %v1816 = vmul.f32 %v1716, %v1716
  %v1817 = vmul.f32 %v1717, %v1717
  %v1818 = vmul.f32 %v1718, %v1718
  %v1819 = vmul.f32 %v1719, %v1719
  %v1820 = vmul.f32 %v1720, %v1720
  %v1821 = vmul.f32 %v1721, %v1721
  %v1822 = vmul.f32 %v1722, %v1722
  %v1823 = vmul.f32 %v1723, %v1723
  %v1824 = vmul.f32 %v1724, %v1724
  %v1825 = vmul.f32 %v1725, %v1725
  %v1826 = vmul.f32 %v1726, %v1726
  %v1827 = vmul.f32 %v1727, %v1727
  %v1828 = vmul.f32 %v1728, %v1728
  %v1829 = vmul.f32 %v1729, %v1729
  %v1830 = vmul.f32 %v1730, %v1730
  %v1831 = vmul.f32 %v1731, %v1731
  %v1832 = vmul.f32 %v1732, %v1732
  %v1833 = vmul.f32 %v1733, %v1733
  %v1834 = vmul.f32 %v1734, %v1734
  %v1835 = vmul.f32 %v1735, %v1735
  %v1836 = vmul.f32 %v1736, %v1736
  %v1837 = vmul.f32 %v1737, %v1737
  %v1838 = vmul.f32 %v1738, %v1738
  %v1839 = vadd.f32 %v1806, %v1807
  %v1840 = vadd.f32 %v1839, %v1808
  %v1841 = vadd.f32 %v1840, %v1809
  %v1842 = vadd.f32 %v1841, %v1810
  %v1843 = vadd.f32 %v1842, %v1811
  %v1844 = vadd.f32 %v1843, %v1812
  %v1845 = vadd.f32 %v1844, %v1813
  %v1846 = vadd.f32 %v1845, %v1814
  %v1847 = vadd.f32 %v1846, %v1815
  %v1848 = vadd.f32 %v1847, %v1816
  %v1849 = vadd.f32 %v1848, %v1817
  %v1850 = vadd.f32 %v1849, %v1818
  %v1851 = vadd.f32 %v1850, %v1819
  %v1852 = vadd.f32 %v1851, %v1820
  %v1853 = vadd.f32 %v1852, %v1821
  %v1854 = vadd.f32 %v1853, %v1822
  %v1855 = vadd.f32 %v1854, %v1823
  %v1856 = vadd.f32 %v1855, %v1824
  %v1857 = vadd.f32 %v1856, %v1825
  %v1858 = vadd.f32 %v1857, %v1826
  %v1859 = vadd.f32 %v1858, %v1827
  %v1860 = vadd.f32 %v1859, %v1828
  %v1861 = vadd.f32 %v1860, %v1829
  %v1862 = vadd.f32 %v1861, %v1830
  %v1863 = vadd.f32 %v1862, %v1831
  %v1864 = vadd.f32 %v1863, %v1832
  %v1865 = vadd.f32 %v1864, %v1833
  %v1866 = vadd.f32 %v1865, %v1834
  %v1867 = vadd.f32 %v1866, %v1835
  %v1868 = vadd.f32 %v1867, %v1836
  %v1869 = vadd.f32 %v1868, %v1837
  %v1870 = vadd.f32 %v1869, %v1838
  %v1871 = vadd.f32 %v1805, %v1870
  %1872 = vst [vmem:[%s2] sm:$0xff] %v1871
  %v1873 = vld [vmem:[%s2 + $0x8] sm:$0xff]
  %v1874 = vmul.f32 %v1283, %v1283
  %v1875 = vmul.f32 %v1290, %v1290
  %v1876 = vmul.f32 %v1297, %v1297
  %v1877 = vmul.f32 %v1304, %v1304
  %v1878 = vmul.f32 %v1311, %v1311
  %v1879 = vmul.f32 %v1318, %v1318
  %v1880 = vmul.f32 %v1325, %v1325
  %v1881 = vmul.f32 %v1332, %v1332
  %v1882 = vmul.f32 %v1339, %v1339
  %v1883 = vmul.f32 %v1346, %v1346
  %v1884 = vmul.f32 %v1353, %v1353
  %v1885 = vmul.f32 %v1360, %v1360
  %v1886 = vmul.f32 %v1367, %v1367
  %v1887 = vmul.f32 %v1374, %v1374
  %v1888 = vmul.f32 %v1381, %v1381
  %v1889 = vmul.f32 %v1388, %v1388
  %v1890 = vmul.f32 %v1395, %v1395
  %v1891 = vmul.f32 %v1402, %v1402
  %v1892 = vmul.f32 %v1409, %v1409
  %v1893 = vmul.f32 %v1416, %v1416
  %v1894 = vmul.f32 %v1423, %v1423
  %v1895 = vmul.f32 %v1430, %v1430
  %v1896 = vmul.f32 %v1437, %v1437
  %v1897 = vmul.f32 %v1444, %v1444
  %v1898 = vmul.f32 %v1451, %v1451
  %v1899 = vmul.f32 %v1458, %v1458
  %v1900 = vmul.f32 %v1465, %v1465
  %v1901 = vmul.f32 %v1472, %v1472
  %v1902 = vmul.f32 %v1479, %v1479
  %v1903 = vmul.f32 %v1486, %v1486
  %v1904 = vmul.f32 %v1493, %v1493
  %v1905 = vmul.f32 %v1500, %v1500
  %v1906 = vmul.f32 %v1507, %v1507
  %v1907 = vadd.f32 %v1874, %v1875
  %v1908 = vadd.f32 %v1907, %v1876
  %v1909 = vadd.f32 %v1908, %v1877
  %v1910 = vadd.f32 %v1909, %v1878
  %v1911 = vadd.f32 %v1910, %v1879
  %v1912 = vadd.f32 %v1911, %v1880
  %v1913 = vadd.f32 %v1912, %v1881
  %v1914 = vadd.f32 %v1913, %v1882
  %v1915 = vadd.f32 %v1914, %v1883
  %v1916 = vadd.f32 %v1915, %v1884
  %v1917 = vadd.f32 %v1916, %v1885
  %v1918 = vadd.f32 %v1917, %v1886
  %v1919 = vadd.f32 %v1918, %v1887
  %v1920 = vadd.f32 %v1919, %v1888
  %v1921 = vadd.f32 %v1920, %v1889
  %v1922 = vadd.f32 %v1921, %v1890
  %v1923 = vadd.f32 %v1922, %v1891
  %v1924 = vadd.f32 %v1923, %v1892
  %v1925 = vadd.f32 %v1924, %v1893
  %v1926 = vadd.f32 %v1925, %v1894
  %v1927 = vadd.f32 %v1926, %v1895
  %v1928 = vadd.f32 %v1927, %v1896
  %v1929 = vadd.f32 %v1928, %v1897
  %v1930 = vadd.f32 %v1929, %v1898
  %v1931 = vadd.f32 %v1930, %v1899
  %v1932 = vadd.f32 %v1931, %v1900
  %v1933 = vadd.f32 %v1932, %v1901
  %v1934 = vadd.f32 %v1933, %v1902
  %v1935 = vadd.f32 %v1934, %v1903
  %v1936 = vadd.f32 %v1935, %v1904
  %v1937 = vadd.f32 %v1936, %v1905
  %v1938 = vadd.f32 %v1937, %v1906
  %v1939 = vadd.f32 %v1873, %v1938
  %1940 = vst [vmem:[%s2 + $0x8] sm:$0xff] %v1939
  %v1941 = vld [vmem:[%s2 + $0x10] sm:$0xff]
  %v1942 = vadd.f32 %v1772, %v1773
  %v1943 = vadd.f32 %v1942, %v1774
  %v1944 = vadd.f32 %v1943, %v1775
  %v1945 = vadd.f32 %v1944, %v1776
  %v1946 = vadd.f32 %v1945, %v1777
  %v1947 = vadd.f32 %v1946, %v1778
  %v1948 = vadd.f32 %v1947, %v1779
  %v1949 = vadd.f32 %v1948, %v1780
  %v1950 = vadd.f32 %v1949, %v1781
  %v1951 = vadd.f32 %v1950, %v1782
  %v1952 = vadd.f32 %v1951, %v1783
  %v1953 = vadd.f32 %v1952, %v1784
  %v1954 = vadd.f32 %v1953, %v1785
  %v1955 = vadd.f32 %v1954, %v1786
  %v1956 = vadd.f32 %v1955, %v1787
  %v1957 = vadd.f32 %v1956, %v1788
  %v1958 = vadd.f32 %v1957, %v1789
  %v1959 = vadd.f32 %v1958, %v1790
  %v1960 = vadd.f32 %v1959, %v1791
  %v1961 = vadd.f32 %v1960, %v1792
  %v1962 = vadd.f32 %v1961, %v1793
  %v1963 = vadd.f32 %v1962, %v1794
  %v1964 = vadd.f32 %v1963, %v1795
  %v1965 = vadd.f32 %v1964, %v1796
  %v1966 = vadd.f32 %v1965, %v1797
  %v1967 = vadd.f32 %v1966, %v1798
  %v1968 = vadd.f32 %v1967, %v1799
  %v1969 = vadd.f32 %v1968, %v1800
  %v1970 = vadd.f32 %v1969, %v1801
  %v1971 = vadd.f32 %v1970, %v1802
  %v1972 = vadd.f32 %v1971, %v1803
  %v1973 = vadd.f32 %v1972, %v1804
  %v1974 = vadd.f32 %v1941, %v1973
  %1975 = vst [vmem:[%s2 + $0x10] sm:$0xff] %v1974
  // Predicated region
  $region14: #{stft_loss.1} parent=0 // pred_check
    _
  $region15: #{stft_loss.1} parent=0 // pred_check_branch
    %1977 = sbr.rel (0) target = $region17
  $region16: #{stft_loss.1} parent=0 // pred_region
    _
  $region17: #{stft_loss.1} parent=0 // pred_fallthru
    _
  // Predicated region
  $region18: #{stft_loss.1} parent=0 // pred_check
    _
  $region19: #{stft_loss.1} parent=0 // pred_check_branch
    %1979 = sbr.rel (0) target = $region21
  $region20: #{stft_loss.1} parent=0 // pred_region
    _
  $region21: #{stft_loss.1} parent=0 // pred_fallthru
    _

</llo_original>
